<compile_context>
chip_gen: v6e
topology: v6e:2x2x1
jax: 0.10.0
libtpu: 0.0.40
codegen_flags: <defaults>
</compile_context>

<pallas_src>
import functools
import math

import jax
import jax.numpy as jnp
from jax import lax
from jax.experimental import pallas as pl
from jax.experimental.pallas import tpu as pltpu


def decoder_layer_kernel(x_ref, y_ref, mask_ref, w_ref, w2_ref, b_ref, out_ref,
                         *, batch_tile, seq, d_model, num_heads, hidden, eps):
    Bt, S, D, H, HID = batch_tile, seq, d_model, num_heads, hidden
    dh = D // H
    N = Bt * S

    # ---- static slab column offsets ----
    # weight slab (bf16, (D, 8D+HID)):
    W_SQKV, W_SO, W_CQ, W_CKV, W_CO, W_F1 = 0, 3 * D, 4 * D, 5 * D, 7 * D, 8 * D
    # bias / scale slab (f32, (1, 15D+HID)):
    B_SQKV, B_SO, B_CQ, B_CKV, B_CO = 0, 3 * D, 4 * D, 5 * D, 7 * D
    B_F1, B_F2 = 8 * D, 8 * D + HID
    B_G1, B_BE1 = 9 * D + HID, 10 * D + HID
    B_G2, B_BE2 = 11 * D + HID, 12 * D + HID
    B_G3, B_BE3 = 13 * D + HID, 14 * D + HID

    x = x_ref[...].astype(jnp.float32)          # (N, D) decoder activations
    y = y_ref[...].astype(jnp.float32)          # (N, D) encoder output
    mask = mask_ref[...].astype(jnp.float32)    # (S, S) additive mask

    def w(lo, width):                            # bf16 weight slice (D, width)
        return w_ref[:, lo:lo + width]

    def b(lo, width):                            # f32 bias/scale slice (1, width)
        return b_ref[:, lo:lo + width]

    def softmax(s):                              # f32 in / f32 out, last axis
        m = jnp.max(s, axis=-1, keepdims=True)
        e = jnp.exp(s - m)
        l = jnp.sum(e, axis=-1, keepdims=True)
        return e * pl.reciprocal(l, approx=True)  # EUP slot, ~free

    def layer_norm(t, g_lo, be_lo):
        mu = jnp.mean(t, axis=-1, keepdims=True)
        tc = t - mu
        var = jnp.mean(tc * tc, axis=-1, keepdims=True)
        return tc * lax.rsqrt(var + eps) * b(g_lo, D) + b(be_lo, D)

    def split_heads(t):                          # (N, D) f32 -> (H*Bt, S, dh) bf16
        t3 = t.reshape(Bt, S, D).astype(jnp.bfloat16)
        return jnp.concatenate(
            [t3[:, :, h * dh:(h + 1) * dh] for h in range(H)], axis=0)

    def merge_heads(c):                          # (H*Bt, S, dh) f32 -> (N, D) f32
        parts = [c[h * Bt:(h + 1) * Bt] for h in range(H)]
        return jnp.concatenate(parts, axis=-1).reshape(N, D)

    def attention(q, k, v, add_mask):
        # q/k/v: (N, D) f32, biases already added, q already scaled by 1/sqrt(dh)
        qh, kh, vh = split_heads(q), split_heads(k), split_heads(v)
        s = lax.dot_general(qh, kh, (((2,), (2,)), ((0,), (0,))),
                            preferred_element_type=jnp.float32)      # (H*Bt, S, S)
        if add_mask:
            s = s + mask                          # broadcast over (head, batch)
        p = softmax(s)
        ctx = lax.dot_general(p.astype(jnp.bfloat16), vh,
                              (((2,), (1,)), ((0,), (0,))),
                              preferred_element_type=jnp.float32)    # (H*Bt, S, dh)
        return merge_heads(ctx)

    # ---- masked multi-head self-attention + dropout(identity) + add & norm ----
    x_bf = x.astype(jnp.bfloat16)
    qkv = jnp.dot(x_bf, w(W_SQKV, 3 * D),
                  preferred_element_type=jnp.float32) + b(B_SQKV, 3 * D)
    attn = attention(qkv[:, 0:D], qkv[:, D:2 * D], qkv[:, 2 * D:3 * D], True)
    attn = jnp.dot(attn.astype(jnp.bfloat16), w(W_SO, D),
                   preferred_element_type=jnp.float32) + b(B_SO, D)
    x1 = layer_norm(attn + x, B_G1, B_BE1)

    # ---- cross-attention (q from decoder, k/v from encoder) + add & norm ----
    qc = jnp.dot(x1.astype(jnp.bfloat16), w(W_CQ, D),
                 preferred_element_type=jnp.float32) + b(B_CQ, D)
    kvc = jnp.dot(y.astype(jnp.bfloat16), w(W_CKV, 2 * D),
                  preferred_element_type=jnp.float32) + b(B_CKV, 2 * D)
    catt = attention(qc, kvc[:, 0:D], kvc[:, D:2 * D], False)
    catt = jnp.dot(catt.astype(jnp.bfloat16), w(W_CO, D),
                   preferred_element_type=jnp.float32) + b(B_CO, D)
    x2 = layer_norm(catt + x1, B_G2, B_BE2)

    # ---- position-wise feed-forward (Linear -> ReLU -> Linear) + add & norm ----
    h1 = jnp.maximum(
        jnp.dot(x2.astype(jnp.bfloat16), w(W_F1, HID),
                preferred_element_type=jnp.float32) + b(B_F1, HID), 0.0)
    ff = jnp.dot(h1.astype(jnp.bfloat16), w2_ref[...],
                 preferred_element_type=jnp.float32) + b(B_F2, D)
    x3 = layer_norm(ff + x2, B_G3, B_BE3)

    # TODO(synk): dropout layers are identity here (eval mode); training-mode
    # dropout would need pltpu.prng_seed / pltpu.prng_random_bits.
    out_ref[...] = x3.astype(out_ref.dtype)


def init_params(key, d_model, hidden_units):
    """Deterministic parameter init (nn.Linear-style: y = x @ W + b)."""
    ks = iter(jax.random.split(key, 32))

    def lin(din, dout):
        w = jax.random.normal(next(ks), (din, dout), jnp.float32) / math.sqrt(din)
        b = jax.random.normal(next(ks), (1, dout), jnp.float32) * 0.01
        return w, b

    p = {}
    for pre in ("self", "cross"):
        for name in ("q", "k", "v", "o"):
            w, b = lin(d_model, d_model)
            p[f"{pre}_w{name}"], p[f"{pre}_b{name}"] = w, b
    for i in (1, 2, 3):
        p[f"gamma{i}"] = jnp.ones((1, d_model), jnp.float32)
        p[f"beta{i}"] = jnp.zeros((1, d_model), jnp.float32)
    p["fw1"], p["fb1"] = lin(d_model, hidden_units)
    p["fw2"], p["fb2"] = lin(hidden_units, d_model)
    return p


def pack_decoder_params(params, *, d_model, num_heads, hidden_units):
    """Host-side, ONCE-per-init packing of all constants into 3 slabs.

    Layout (columns):
      weight slab bf16 (D, 8D+HID): [selfQ*s|selfK|selfV | selfO | crossQ*s |
                                     crossK|crossV | crossO | ffW1]
      bias  slab f32  (1, 15D+HID): [selfQ*s,K,V | selfO | crossQ*s | crossK,V |
                                     crossO | ffB1 | ffB2 | g1,b1 | g2,b2 | g3,b3]
    The 1/sqrt(dh) scale is folded into the Q weights and biases.
    """
    D, H, HID = d_model, num_heads, hidden_units
    scale = 1.0 / math.sqrt(D // H)

    w_cols = [params["self_wq"] * scale, params["self_wk"], params["self_wv"],
              params["self_wo"],
              params["cross_wq"] * scale,
              params["cross_wk"], params["cross_wv"],
              params["cross_wo"],
              params["fw1"]]
    w_slab = jnp.concatenate(w_cols, axis=1).astype(jnp.bfloat16)     # (D, 8D+HID)
    w2_slab = params["fw2"].astype(jnp.bfloat16)                      # (HID, D)

    b_cols = [params["self_bq"] * scale, params["self_bk"], params["self_bv"],
              params["self_bo"],
              params["cross_bq"] * scale,
              params["cross_bk"], params["cross_bv"],
              params["cross_bo"],
              params["fb1"], params["fb2"],
              params["gamma1"], params["beta1"],
              params["gamma2"], params["beta2"],
              params["gamma3"], params["beta3"]]
    b_slab = jnp.concatenate(b_cols, axis=1).astype(jnp.float32)      # (1, 15D+HID)
    return {"w": w_slab, "w2": w2_slab, "b": b_slab}


def _pick_batch_tile(B, S):
    """Rows-per-grid-step choice, generation aware.

    v7x has 2 TensorCores/chip -> keep >= 2 'parallel' grid steps when B allows;
    v5e/v6e have 1 TC -> one fat step amortizes the ~0.35us/step overhead and
    fills more MXU rows.  Target ~256 stacked rows per matmul.
    """
    kind = ""
    try:
        kind = jax.devices()[0].device_kind.lower()
    except Exception:
        pass
    min_steps = 2 if ("v7" in kind and B >= 2) else 1
    target_rows = 256
    best = None
    for bt in range(1, B + 1):
        if B % bt:
            continue
        if B // bt < min_steps:
            continue
        score = abs(bt * S - target_rows)
        if best is None or score < best[1]:
            best = (bt, score)
    if best is None:
        best = (B, 0)
    return best[0]


def decoder_layer(x, y, mask, packed, *, num_heads, eps):
    B, S, D = x.shape
    HID = packed["w2"].shape[0]
    Bt = _pick_batch_tile(B, S)
    steps = B // Bt
    rows = Bt * S

    # present activations / output as lane-dense row slabs
    xf = x.reshape(B * S, D)
    yf = y.reshape(B * S, D)

    kernel = functools.partial(decoder_layer_kernel, batch_tile=Bt, seq=S,
                               d_model=D, num_heads=num_heads, hidden=HID,
                               eps=eps)

    # VMEM budget: tiny working set; cap well under v7x's 64 MiB.
    const_bytes = sum(int(a.size) * a.dtype.itemsize
                      for a in (packed["w"], packed["w2"], packed["b"], mask))
    act_bytes = 3 * rows * D * 4
    vmem_limit = min(max(8 * (const_bytes + act_bytes), 16 * 1024 * 1024),
                     48 * 1024 * 1024)

    def const_spec(shape):
        nd = len(shape)
        return pl.BlockSpec(shape, lambda i, _nd=nd: (0,) * _nd)

    out = pl.pallas_call(
        kernel,
        out_shape=jax.ShapeDtypeStruct((B * S, D), x.dtype),
        grid_spec=pltpu.PrefetchScalarGridSpec(
            num_scalar_prefetch=0,
            grid=(steps,),
            in_specs=[pl.BlockSpec((rows, D), lambda i: (i, 0)),
                      pl.BlockSpec((rows, D), lambda i: (i, 0)),
                      const_spec(mask.shape),
                      const_spec(packed["w"].shape),
                      const_spec(packed["w2"].shape),
                      const_spec(packed["b"].shape)],
            out_specs=pl.BlockSpec((rows, D), lambda i: (i, 0))),
        compiler_params=pltpu.CompilerParams(
            dimension_semantics=("parallel",),
            vmem_limit_bytes=vmem_limit),
    )(xf, yf, mask, packed["w"], packed["w2"], packed["b"])
    return out.reshape(B, S, D)


def decoder_layer_ref(x, y, mask, params, *, num_heads, eps):
    """Pure-JAX f32 reference for validation."""
    B, S, D = x.shape
    H = num_heads
    dh = D // H

    def ln(t, g, be):
        mu = jnp.mean(t, -1, keepdims=True)
        var = jnp.mean((t - mu) ** 2, -1, keepdims=True)
        return (t - mu) / jnp.sqrt(var + eps) * g + be

    def mha(q_in, kv_in, pre, add_mask):
        q = q_in @ params[f"{pre}_wq"] + params[f"{pre}_bq"]
        k = kv_in @ params[f"{pre}_wk"] + params[f"{pre}_bk"]
        v = kv_in @ params[f"{pre}_wv"] + params[f"{pre}_bv"]

        def heads(t):
            return t.reshape(B, S, H, dh).transpose(0, 2, 1, 3)

        qh, kh, vh = heads(q), heads(k), heads(v)
        s = jnp.einsum("bhqd,bhkd->bhqk", qh, kh) / math.sqrt(dh)
        if add_mask:
            s = s + mask
        p = jax.nn.softmax(s, axis=-1)
        ctx = jnp.einsum("bhqk,bhkd->bhqd", p, vh)
        ctx = ctx.transpose(0, 2, 1, 3).reshape(B, S, D)
        return ctx @ params[f"{pre}_wo"] + params[f"{pre}_bo"]

    x1 = ln(mha(x, x, "self", True) + x, params["gamma1"], params["beta1"])
    x2 = ln(mha(x1, y, "cross", False) + x1, params["gamma2"], params["beta2"])
    h = jnp.maximum(x2 @ params["fw1"] + params["fb1"], 0.0)
    ff = h @ params["fw2"] + params["fb2"]
    return ln(ff + x2, params["gamma3"], params["beta3"])


if __name__ == "__main__":
    # Shapes consistent with the module: max_seqlen=8, d_model=32,
    # attention_heads=4, hidden_units=64, eps=1e-5, dropout ignored (eval).
    B, S, D, H, HID = 2, 8, 32, 4, 64
    EPS = 1e-5

    key = jax.random.PRNGKey(0)
    kx, ky, kp = jax.random.split(key, 3)
    x = jax.random.normal(kx, (B, S, D), jnp.float32)    # decoder input
    y = jax.random.normal(ky, (B, S, D), jnp.float32)    # encoder output
    # causal additive mask: 0 where allowed, -1e9 where masked
    mask = jnp.where(jnp.tril(jnp.ones((S, S), dtype=bool)), 0.0, -1e9)
    mask = mask.astype(jnp.float32)

    params = init_params(kp, D, HID)
    packed = pack_decoder_params(params, d_model=D, num_heads=H,
                                 hidden_units=HID)        # packed once, cached

    out = decoder_layer(x, y, mask, packed, num_heads=H, eps=EPS)
    out = jax.block_until_ready(out)
    assert out.shape == (B, S, D)
    assert bool(jnp.all(jnp.isfinite(out)))

    # Loose tolerance: bf16 matmul operands + approximate softmax reciprocal.
    ref = decoder_layer_ref(x, y, mask, params, num_heads=H, eps=EPS)
    err = float(jnp.max(jnp.abs(out - ref)))
    assert err < 1e-1, f"max abs error vs f32 reference too large: {err}"
    print("KERNEL_OK")
</pallas_src>

<mosaic_0001>
module attributes {stable_mosaic.version = 11 : i64} {
  func.func @decoder_layer_kernel(%arg0: i32, %arg1: memref<16x32xf32, #tpu.memory_space<vmem>>, %arg2: memref<16x32xf32, #tpu.memory_space<vmem>>, %arg3: memref<8x8xf32, #tpu.memory_space<vmem>>, %arg4: memref<32x320xbf16, #tpu.memory_space<vmem>>, %arg5: memref<64x32xbf16, #tpu.memory_space<vmem>>, %arg6: memref<1x544xf32, #tpu.memory_space<vmem>>, %arg7: memref<16x32xf32, #tpu.memory_space<vmem>>) attributes {dimension_semantics = [#tpu.dimension_semantics<parallel>], iteration_bounds = array<i64: 1>, scalar_prefetch = 0 : i64, scratch_operands = 0 : i64, tpu.core_type = #tpu.core_type<tc>, window_params = [{transform_indices = @transform_0, window_bounds = array<i64: 16, 32>}, {transform_indices = @transform_1, window_bounds = array<i64: 16, 32>}, {pipeline_mode = #tpu.pipeline_mode<synchronous>, transform_indices = @transform_2, window_bounds = array<i64: 8, 8>}, {pipeline_mode = #tpu.pipeline_mode<synchronous>, transform_indices = @transform_3, window_bounds = array<i64: 32, 320>}, {pipeline_mode = #tpu.pipeline_mode<synchronous>, transform_indices = @transform_4, window_bounds = array<i64: 64, 32>}, {pipeline_mode = #tpu.pipeline_mode<synchronous>, transform_indices = @transform_5, window_bounds = array<i64: 1, 544>}, {transform_indices = @transform_6, window_bounds = array<i64: 16, 32>}]} {
    %c0 = arith.constant 0 : index
    %c0_0 = arith.constant 0 : index
    %0 = vector.load %arg1[%c0, %c0_0] : memref<16x32xf32, #tpu.memory_space<vmem>>, vector<16x32xf32>
    %c0_1 = arith.constant 0 : index
    %c0_2 = arith.constant 0 : index
    %1 = vector.load %arg2[%c0_1, %c0_2] : memref<16x32xf32, #tpu.memory_space<vmem>>, vector<16x32xf32>
    %c0_3 = arith.constant 0 : index
    %c0_4 = arith.constant 0 : index
    %2 = vector.load %arg3[%c0_3, %c0_4] : memref<8x8xf32, #tpu.memory_space<vmem>>, vector<8x8xf32>
    %3 = arith.truncf %0 : vector<16x32xf32> to vector<16x32xbf16>
    %c0_5 = arith.constant 0 : index
    %c0_6 = arith.constant 0 : index
    %4 = vector.load %arg4[%c0_5, %c0_6] : memref<32x320xbf16, #tpu.memory_space<vmem>>, vector<32x96xbf16>
    %cst = arith.constant dense<0.000000e+00> : vector<16x96xf32>
    %5 = tpu.matmul %3, %4, %cst {dimension_numbers = #tpu.dot_dimension_numbers<[1], [0], [0], [1], [0, 0, 1, 1], [], []>} : vector<16x32xbf16>, vector<32x96xbf16>, vector<16x96xf32> -> vector<16x96xf32>
    %c0_7 = arith.constant 0 : index
    %c0_8 = arith.constant 0 : index
    %6 = vector.load %arg6[%c0_7, %c0_8] : memref<1x544xf32, #tpu.memory_space<vmem>>, vector<1x96xf32>
    %7 = vector.broadcast %6 : vector<1x96xf32> to vector<16x96xf32>
    %8 = arith.addf %5, %7 : vector<16x96xf32>
    %9 = vector.extract_strided_slice %8 {offsets = [0, 0], sizes = [16, 32], strides = [1, 1]} : vector<16x96xf32> to vector<16x32xf32>
    %10 = vector.extract_strided_slice %8 {offsets = [0, 32], sizes = [16, 32], strides = [1, 1]} : vector<16x96xf32> to vector<16x32xf32>
    %11 = vector.extract_strided_slice %8 {offsets = [0, 64], sizes = [16, 32], strides = [1, 1]} : vector<16x96xf32> to vector<16x32xf32>
    %12 = vector.shape_cast %9 : vector<16x32xf32> to vector<2x8x32xf32>
    %13 = arith.truncf %12 : vector<2x8x32xf32> to vector<2x8x32xbf16>
    %14 = vector.extract_strided_slice %13 {offsets = [0, 0, 0], sizes = [2, 8, 8], strides = [1, 1, 1]} : vector<2x8x32xbf16> to vector<2x8x8xbf16>
    %15 = vector.extract_strided_slice %13 {offsets = [0, 0, 8], sizes = [2, 8, 8], strides = [1, 1, 1]} : vector<2x8x32xbf16> to vector<2x8x8xbf16>
    %16 = vector.extract_strided_slice %13 {offsets = [0, 0, 16], sizes = [2, 8, 8], strides = [1, 1, 1]} : vector<2x8x32xbf16> to vector<2x8x8xbf16>
    %17 = vector.extract_strided_slice %13 {offsets = [0, 0, 24], sizes = [2, 8, 8], strides = [1, 1, 1]} : vector<2x8x32xbf16> to vector<2x8x8xbf16>
    %18 = tpu.concatenate %14, %15, %16, %17 in 0 : vector<2x8x8xbf16>, vector<2x8x8xbf16>, vector<2x8x8xbf16>, vector<2x8x8xbf16> -> vector<8x8x8xbf16>
    %19 = vector.shape_cast %10 : vector<16x32xf32> to vector<2x8x32xf32>
    %20 = arith.truncf %19 : vector<2x8x32xf32> to vector<2x8x32xbf16>
    %21 = vector.extract_strided_slice %20 {offsets = [0, 0, 0], sizes = [2, 8, 8], strides = [1, 1, 1]} : vector<2x8x32xbf16> to vector<2x8x8xbf16>
    %22 = vector.extract_strided_slice %20 {offsets = [0, 0, 8], sizes = [2, 8, 8], strides = [1, 1, 1]} : vector<2x8x32xbf16> to vector<2x8x8xbf16>
    %23 = vector.extract_strided_slice %20 {offsets = [0, 0, 16], sizes = [2, 8, 8], strides = [1, 1, 1]} : vector<2x8x32xbf16> to vector<2x8x8xbf16>
    %24 = vector.extract_strided_slice %20 {offsets = [0, 0, 24], sizes = [2, 8, 8], strides = [1, 1, 1]} : vector<2x8x32xbf16> to vector<2x8x8xbf16>
    %25 = tpu.concatenate %21, %22, %23, %24 in 0 : vector<2x8x8xbf16>, vector<2x8x8xbf16>, vector<2x8x8xbf16>, vector<2x8x8xbf16> -> vector<8x8x8xbf16>
    %26 = vector.shape_cast %11 : vector<16x32xf32> to vector<2x8x32xf32>
    %27 = arith.truncf %26 : vector<2x8x32xf32> to vector<2x8x32xbf16>
    %28 = vector.extract_strided_slice %27 {offsets = [0, 0, 0], sizes = [2, 8, 8], strides = [1, 1, 1]} : vector<2x8x32xbf16> to vector<2x8x8xbf16>
    %29 = vector.extract_strided_slice %27 {offsets = [0, 0, 8], sizes = [2, 8, 8], strides = [1, 1, 1]} : vector<2x8x32xbf16> to vector<2x8x8xbf16>
    %30 = vector.extract_strided_slice %27 {offsets = [0, 0, 16], sizes = [2, 8, 8], strides = [1, 1, 1]} : vector<2x8x32xbf16> to vector<2x8x8xbf16>
    %31 = vector.extract_strided_slice %27 {offsets = [0, 0, 24], sizes = [2, 8, 8], strides = [1, 1, 1]} : vector<2x8x32xbf16> to vector<2x8x8xbf16>
    %32 = tpu.concatenate %28, %29, %30, %31 in 0 : vector<2x8x8xbf16>, vector<2x8x8xbf16>, vector<2x8x8xbf16>, vector<2x8x8xbf16> -> vector<8x8x8xbf16>
    %cst_9 = arith.constant dense<0.000000e+00> : vector<8x8x8xf32>
    %33 = tpu.matmul %18, %25, %cst_9 {dimension_numbers = #tpu.dot_dimension_numbers<[2], [2], [1], [1], [0, 0, 0, 1, 1, 1], [0], [0]>} : vector<8x8x8xbf16>, vector<8x8x8xbf16>, vector<8x8x8xf32> -> vector<8x8x8xf32>
    %34 = vector.shape_cast %2 : vector<8x8xf32> to vector<1x8x8xf32>
    %35 = vector.broadcast %34 : vector<1x8x8xf32> to vector<8x8x8xf32>
    %36 = arith.addf %33, %35 : vector<8x8x8xf32>
    %cst_10 = arith.constant dense<0xFF800000> : vector<8x8xf32>
    %37 = vector.multi_reduction <maximumf>, %36, %cst_10 [2] : vector<8x8x8xf32> to vector<8x8xf32>
    %38 = vector.shape_cast %37 : vector<8x8xf32> to vector<8x8x1xf32>
    %39 = vector.broadcast %38 : vector<8x8x1xf32> to vector<8x8x8xf32>
    %40 = arith.subf %36, %39 : vector<8x8x8xf32>
    %41 = math.exp %40 : vector<8x8x8xf32>
    %cst_11 = arith.constant dense<0.000000e+00> : vector<8x8xf32>
    %42 = vector.multi_reduction <add>, %41, %cst_11 [2] : vector<8x8x8xf32> to vector<8x8xf32>
    %43 = vector.shape_cast %42 : vector<8x8xf32> to vector<8x8x1xf32>
    %44 = tpu.reciprocal %43 {approx = true} : vector<8x8x1xf32> -> vector<8x8x1xf32>
    %45 = vector.broadcast %44 : vector<8x8x1xf32> to vector<8x8x8xf32>
    %46 = arith.mulf %41, %45 : vector<8x8x8xf32>
    %47 = arith.truncf %46 : vector<8x8x8xf32> to vector<8x8x8xbf16>
    %cst_12 = arith.constant dense<0.000000e+00> : vector<8x8x8xf32>
    %48 = tpu.matmul %47, %32, %cst_12 {dimension_numbers = #tpu.dot_dimension_numbers<[2], [1], [1], [2], [0, 0, 0, 1, 1, 2], [0], [0]>} : vector<8x8x8xbf16>, vector<8x8x8xbf16>, vector<8x8x8xf32> -> vector<8x8x8xf32>
    %49 = vector.extract_strided_slice %48 {offsets = [0, 0, 0], sizes = [2, 8, 8], strides = [1, 1, 1]} : vector<8x8x8xf32> to vector<2x8x8xf32>
    %50 = vector.extract_strided_slice %48 {offsets = [2, 0, 0], sizes = [2, 8, 8], strides = [1, 1, 1]} : vector<8x8x8xf32> to vector<2x8x8xf32>
    %51 = vector.extract_strided_slice %48 {offsets = [4, 0, 0], sizes = [2, 8, 8], strides = [1, 1, 1]} : vector<8x8x8xf32> to vector<2x8x8xf32>
    %52 = vector.extract_strided_slice %48 {offsets = [6, 0, 0], sizes = [2, 8, 8], strides = [1, 1, 1]} : vector<8x8x8xf32> to vector<2x8x8xf32>
    %53 = tpu.concatenate %49, %50, %51, %52 in 2 : vector<2x8x8xf32>, vector<2x8x8xf32>, vector<2x8x8xf32>, vector<2x8x8xf32> -> vector<2x8x32xf32>
    %54 = vector.shape_cast %53 : vector<2x8x32xf32> to vector<16x32xf32>
    %55 = arith.truncf %54 : vector<16x32xf32> to vector<16x32xbf16>
    %c0_13 = arith.constant 0 : index
    %c96 = arith.constant 96 : index
    %56 = vector.load %arg4[%c0_13, %c96] : memref<32x320xbf16, #tpu.memory_space<vmem>>, vector<32x32xbf16>
    %cst_14 = arith.constant dense<0.000000e+00> : vector<16x32xf32>
    %57 = tpu.matmul %55, %56, %cst_14 {dimension_numbers = #tpu.dot_dimension_numbers<[1], [0], [0], [1], [0, 0, 1, 1], [], []>} : vector<16x32xbf16>, vector<32x32xbf16>, vector<16x32xf32> -> vector<16x32xf32>
    %c0_15 = arith.constant 0 : index
    %c96_16 = arith.constant 96 : index
    %58 = vector.load %arg6[%c0_15, %c96_16] : memref<1x544xf32, #tpu.memory_space<vmem>>, vector<1x32xf32>
    %59 = vector.broadcast %58 : vector<1x32xf32> to vector<16x32xf32>
    %60 = arith.addf %57, %59 : vector<16x32xf32>
    %61 = arith.addf %60, %0 : vector<16x32xf32>
    %cst_17 = arith.constant dense<0.000000e+00> : vector<16xf32>
    %62 = vector.multi_reduction <add>, %61, %cst_17 [1] : vector<16x32xf32> to vector<16xf32>
    %63 = vector.shape_cast %62 : vector<16xf32> to vector<16x1xf32>
    %cst_18 = arith.constant 3.200000e+01 : f32
    %64 = vector.broadcast %cst_18 : f32 to vector<16x1xf32>
    %65 = arith.divf %63, %64 : vector<16x1xf32>
    %66 = vector.broadcast %65 : vector<16x1xf32> to vector<16x32xf32>
    %67 = arith.subf %61, %66 : vector<16x32xf32>
    %68 = arith.mulf %67, %67 : vector<16x32xf32>
    %cst_19 = arith.constant dense<0.000000e+00> : vector<16xf32>
    %69 = vector.multi_reduction <add>, %68, %cst_19 [1] : vector<16x32xf32> to vector<16xf32>
    %70 = vector.shape_cast %69 : vector<16xf32> to vector<16x1xf32>
    %cst_20 = arith.constant 3.200000e+01 : f32
    %71 = vector.broadcast %cst_20 : f32 to vector<16x1xf32>
    %72 = arith.divf %70, %71 : vector<16x1xf32>
    %cst_21 = arith.constant 9.99999974E-6 : f32
    %73 = vector.broadcast %cst_21 : f32 to vector<16x1xf32>
    %74 = arith.addf %72, %73 : vector<16x1xf32>
    %75 = math.rsqrt %74 : vector<16x1xf32>
    %76 = vector.broadcast %75 : vector<16x1xf32> to vector<16x32xf32>
    %77 = arith.mulf %67, %76 : vector<16x32xf32>
    %c0_22 = arith.constant 0 : index
    %c352 = arith.constant 352 : index
    %78 = vector.load %arg6[%c0_22, %c352] : memref<1x544xf32, #tpu.memory_space<vmem>>, vector<1x32xf32>
    %79 = vector.broadcast %78 : vector<1x32xf32> to vector<16x32xf32>
    %80 = arith.mulf %77, %79 : vector<16x32xf32>
    %c0_23 = arith.constant 0 : index
    %c384 = arith.constant 384 : index
    %81 = vector.load %arg6[%c0_23, %c384] : memref<1x544xf32, #tpu.memory_space<vmem>>, vector<1x32xf32>
    %82 = vector.broadcast %81 : vector<1x32xf32> to vector<16x32xf32>
    %83 = arith.addf %80, %82 : vector<16x32xf32>
    %84 = arith.truncf %83 : vector<16x32xf32> to vector<16x32xbf16>
    %c0_24 = arith.constant 0 : index
    %c128 = arith.constant 128 : index
    %85 = vector.load %arg4[%c0_24, %c128] : memref<32x320xbf16, #tpu.memory_space<vmem>>, vector<32x32xbf16>
    %cst_25 = arith.constant dense<0.000000e+00> : vector<16x32xf32>
    %86 = tpu.matmul %84, %85, %cst_25 {dimension_numbers = #tpu.dot_dimension_numbers<[1], [0], [0], [1], [0, 0, 1, 1], [], []>} : vector<16x32xbf16>, vector<32x32xbf16>, vector<16x32xf32> -> vector<16x32xf32>
    %c0_26 = arith.constant 0 : index
    %c128_27 = arith.constant 128 : index
    %87 = vector.load %arg6[%c0_26, %c128_27] : memref<1x544xf32, #tpu.memory_space<vmem>>, vector<1x32xf32>
    %88 = vector.broadcast %87 : vector<1x32xf32> to vector<16x32xf32>
    %89 = arith.addf %86, %88 : vector<16x32xf32>
    %90 = arith.truncf %1 : vector<16x32xf32> to vector<16x32xbf16>
    %c0_28 = arith.constant 0 : index
    %c160 = arith.constant 160 : index
    %91 = vector.load %arg4[%c0_28, %c160] : memref<32x320xbf16, #tpu.memory_space<vmem>>, vector<32x64xbf16>
    %cst_29 = arith.constant dense<0.000000e+00> : vector<16x64xf32>
    %92 = tpu.matmul %90, %91, %cst_29 {dimension_numbers = #tpu.dot_dimension_numbers<[1], [0], [0], [1], [0, 0, 1, 1], [], []>} : vector<16x32xbf16>, vector<32x64xbf16>, vector<16x64xf32> -> vector<16x64xf32>
    %c0_30 = arith.constant 0 : index
    %c160_31 = arith.constant 160 : index
    %93 = vector.load %arg6[%c0_30, %c160_31] : memref<1x544xf32, #tpu.memory_space<vmem>>, vector<1x64xf32>
    %94 = vector.broadcast %93 : vector<1x64xf32> to vector<16x64xf32>
    %95 = arith.addf %92, %94 : vector<16x64xf32>
    %96 = vector.extract_strided_slice %95 {offsets = [0, 0], sizes = [16, 32], strides = [1, 1]} : vector<16x64xf32> to vector<16x32xf32>
    %97 = vector.extract_strided_slice %95 {offsets = [0, 32], sizes = [16, 32], strides = [1, 1]} : vector<16x64xf32> to vector<16x32xf32>
    %98 = vector.shape_cast %89 : vector<16x32xf32> to vector<2x8x32xf32>
    %99 = arith.truncf %98 : vector<2x8x32xf32> to vector<2x8x32xbf16>
    %100 = vector.extract_strided_slice %99 {offsets = [0, 0, 0], sizes = [2, 8, 8], strides = [1, 1, 1]} : vector<2x8x32xbf16> to vector<2x8x8xbf16>
    %101 = vector.extract_strided_slice %99 {offsets = [0, 0, 8], sizes = [2, 8, 8], strides = [1, 1, 1]} : vector<2x8x32xbf16> to vector<2x8x8xbf16>
    %102 = vector.extract_strided_slice %99 {offsets = [0, 0, 16], sizes = [2, 8, 8], strides = [1, 1, 1]} : vector<2x8x32xbf16> to vector<2x8x8xbf16>
    %103 = vector.extract_strided_slice %99 {offsets = [0, 0, 24], sizes = [2, 8, 8], strides = [1, 1, 1]} : vector<2x8x32xbf16> to vector<2x8x8xbf16>
    %104 = tpu.concatenate %100, %101, %102, %103 in 0 : vector<2x8x8xbf16>, vector<2x8x8xbf16>, vector<2x8x8xbf16>, vector<2x8x8xbf16> -> vector<8x8x8xbf16>
    %105 = vector.shape_cast %96 : vector<16x32xf32> to vector<2x8x32xf32>
    %106 = arith.truncf %105 : vector<2x8x32xf32> to vector<2x8x32xbf16>
    %107 = vector.extract_strided_slice %106 {offsets = [0, 0, 0], sizes = [2, 8, 8], strides = [1, 1, 1]} : vector<2x8x32xbf16> to vector<2x8x8xbf16>
    %108 = vector.extract_strided_slice %106 {offsets = [0, 0, 8], sizes = [2, 8, 8], strides = [1, 1, 1]} : vector<2x8x32xbf16> to vector<2x8x8xbf16>
    %109 = vector.extract_strided_slice %106 {offsets = [0, 0, 16], sizes = [2, 8, 8], strides = [1, 1, 1]} : vector<2x8x32xbf16> to vector<2x8x8xbf16>
    %110 = vector.extract_strided_slice %106 {offsets = [0, 0, 24], sizes = [2, 8, 8], strides = [1, 1, 1]} : vector<2x8x32xbf16> to vector<2x8x8xbf16>
    %111 = tpu.concatenate %107, %108, %109, %110 in 0 : vector<2x8x8xbf16>, vector<2x8x8xbf16>, vector<2x8x8xbf16>, vector<2x8x8xbf16> -> vector<8x8x8xbf16>
    %112 = vector.shape_cast %97 : vector<16x32xf32> to vector<2x8x32xf32>
    %113 = arith.truncf %112 : vector<2x8x32xf32> to vector<2x8x32xbf16>
    %114 = vector.extract_strided_slice %113 {offsets = [0, 0, 0], sizes = [2, 8, 8], strides = [1, 1, 1]} : vector<2x8x32xbf16> to vector<2x8x8xbf16>
    %115 = vector.extract_strided_slice %113 {offsets = [0, 0, 8], sizes = [2, 8, 8], strides = [1, 1, 1]} : vector<2x8x32xbf16> to vector<2x8x8xbf16>
    %116 = vector.extract_strided_slice %113 {offsets = [0, 0, 16], sizes = [2, 8, 8], strides = [1, 1, 1]} : vector<2x8x32xbf16> to vector<2x8x8xbf16>
    %117 = vector.extract_strided_slice %113 {offsets = [0, 0, 24], sizes = [2, 8, 8], strides = [1, 1, 1]} : vector<2x8x32xbf16> to vector<2x8x8xbf16>
    %118 = tpu.concatenate %114, %115, %116, %117 in 0 : vector<2x8x8xbf16>, vector<2x8x8xbf16>, vector<2x8x8xbf16>, vector<2x8x8xbf16> -> vector<8x8x8xbf16>
    %cst_32 = arith.constant dense<0.000000e+00> : vector<8x8x8xf32>
    %119 = tpu.matmul %104, %111, %cst_32 {dimension_numbers = #tpu.dot_dimension_numbers<[2], [2], [1], [1], [0, 0, 0, 1, 1, 1], [0], [0]>} : vector<8x8x8xbf16>, vector<8x8x8xbf16>, vector<8x8x8xf32> -> vector<8x8x8xf32>
    %cst_33 = arith.constant dense<0xFF800000> : vector<8x8xf32>
    %120 = vector.multi_reduction <maximumf>, %119, %cst_33 [2] : vector<8x8x8xf32> to vector<8x8xf32>
    %121 = vector.shape_cast %120 : vector<8x8xf32> to vector<8x8x1xf32>
    %122 = vector.broadcast %121 : vector<8x8x1xf32> to vector<8x8x8xf32>
    %123 = arith.subf %119, %122 : vector<8x8x8xf32>
    %124 = math.exp %123 : vector<8x8x8xf32>
    %cst_34 = arith.constant dense<0.000000e+00> : vector<8x8xf32>
    %125 = vector.multi_reduction <add>, %124, %cst_34 [2] : vector<8x8x8xf32> to vector<8x8xf32>
    %126 = vector.shape_cast %125 : vector<8x8xf32> to vector<8x8x1xf32>
    %127 = tpu.reciprocal %126 {approx = true} : vector<8x8x1xf32> -> vector<8x8x1xf32>
    %128 = vector.broadcast %127 : vector<8x8x1xf32> to vector<8x8x8xf32>
    %129 = arith.mulf %124, %128 : vector<8x8x8xf32>
    %130 = arith.truncf %129 : vector<8x8x8xf32> to vector<8x8x8xbf16>
    %cst_35 = arith.constant dense<0.000000e+00> : vector<8x8x8xf32>
    %131 = tpu.matmul %130, %118, %cst_35 {dimension_numbers = #tpu.dot_dimension_numbers<[2], [1], [1], [2], [0, 0, 0, 1, 1, 2], [0], [0]>} : vector<8x8x8xbf16>, vector<8x8x8xbf16>, vector<8x8x8xf32> -> vector<8x8x8xf32>
    %132 = vector.extract_strided_slice %131 {offsets = [0, 0, 0], sizes = [2, 8, 8], strides = [1, 1, 1]} : vector<8x8x8xf32> to vector<2x8x8xf32>
    %133 = vector.extract_strided_slice %131 {offsets = [2, 0, 0], sizes = [2, 8, 8], strides = [1, 1, 1]} : vector<8x8x8xf32> to vector<2x8x8xf32>
    %134 = vector.extract_strided_slice %131 {offsets = [4, 0, 0], sizes = [2, 8, 8], strides = [1, 1, 1]} : vector<8x8x8xf32> to vector<2x8x8xf32>
    %135 = vector.extract_strided_slice %131 {offsets = [6, 0, 0], sizes = [2, 8, 8], strides = [1, 1, 1]} : vector<8x8x8xf32> to vector<2x8x8xf32>
    %136 = tpu.concatenate %132, %133, %134, %135 in 2 : vector<2x8x8xf32>, vector<2x8x8xf32>, vector<2x8x8xf32>, vector<2x8x8xf32> -> vector<2x8x32xf32>
    %137 = vector.shape_cast %136 : vector<2x8x32xf32> to vector<16x32xf32>
    %138 = arith.truncf %137 : vector<16x32xf32> to vector<16x32xbf16>
    %c0_36 = arith.constant 0 : index
    %c224 = arith.constant 224 : index
    %139 = vector.load %arg4[%c0_36, %c224] : memref<32x320xbf16, #tpu.memory_space<vmem>>, vector<32x32xbf16>
    %cst_37 = arith.constant dense<0.000000e+00> : vector<16x32xf32>
    %140 = tpu.matmul %138, %139, %cst_37 {dimension_numbers = #tpu.dot_dimension_numbers<[1], [0], [0], [1], [0, 0, 1, 1], [], []>} : vector<16x32xbf16>, vector<32x32xbf16>, vector<16x32xf32> -> vector<16x32xf32>
    %c0_38 = arith.constant 0 : index
    %c224_39 = arith.constant 224 : index
    %141 = vector.load %arg6[%c0_38, %c224_39] : memref<1x544xf32, #tpu.memory_space<vmem>>, vector<1x32xf32>
    %142 = vector.broadcast %141 : vector<1x32xf32> to vector<16x32xf32>
    %143 = arith.addf %140, %142 : vector<16x32xf32>
    %144 = arith.addf %143, %83 : vector<16x32xf32>
    %cst_40 = arith.constant dense<0.000000e+00> : vector<16xf32>
    %145 = vector.multi_reduction <add>, %144, %cst_40 [1] : vector<16x32xf32> to vector<16xf32>
    %146 = vector.shape_cast %145 : vector<16xf32> to vector<16x1xf32>
    %cst_41 = arith.constant 3.200000e+01 : f32
    %147 = vector.broadcast %cst_41 : f32 to vector<16x1xf32>
    %148 = arith.divf %146, %147 : vector<16x1xf32>
    %149 = vector.broadcast %148 : vector<16x1xf32> to vector<16x32xf32>
    %150 = arith.subf %144, %149 : vector<16x32xf32>
    %151 = arith.mulf %150, %150 : vector<16x32xf32>
    %cst_42 = arith.constant dense<0.000000e+00> : vector<16xf32>
    %152 = vector.multi_reduction <add>, %151, %cst_42 [1] : vector<16x32xf32> to vector<16xf32>
    %153 = vector.shape_cast %152 : vector<16xf32> to vector<16x1xf32>
    %cst_43 = arith.constant 3.200000e+01 : f32
    %154 = vector.broadcast %cst_43 : f32 to vector<16x1xf32>
    %155 = arith.divf %153, %154 : vector<16x1xf32>
    %cst_44 = arith.constant 9.99999974E-6 : f32
    %156 = vector.broadcast %cst_44 : f32 to vector<16x1xf32>
    %157 = arith.addf %155, %156 : vector<16x1xf32>
    %158 = math.rsqrt %157 : vector<16x1xf32>
    %159 = vector.broadcast %158 : vector<16x1xf32> to vector<16x32xf32>
    %160 = arith.mulf %150, %159 : vector<16x32xf32>
    %c0_45 = arith.constant 0 : index
    %c416 = arith.constant 416 : index
    %161 = vector.load %arg6[%c0_45, %c416] : memref<1x544xf32, #tpu.memory_space<vmem>>, vector<1x32xf32>
    %162 = vector.broadcast %161 : vector<1x32xf32> to vector<16x32xf32>
    %163 = arith.mulf %160, %162 : vector<16x32xf32>
    %c0_46 = arith.constant 0 : index
    %c448 = arith.constant 448 : index
    %164 = vector.load %arg6[%c0_46, %c448] : memref<1x544xf32, #tpu.memory_space<vmem>>, vector<1x32xf32>
    %165 = vector.broadcast %164 : vector<1x32xf32> to vector<16x32xf32>
    %166 = arith.addf %163, %165 : vector<16x32xf32>
    %167 = arith.truncf %166 : vector<16x32xf32> to vector<16x32xbf16>
    %c0_47 = arith.constant 0 : index
    %c256 = arith.constant 256 : index
    %168 = vector.load %arg4[%c0_47, %c256] : memref<32x320xbf16, #tpu.memory_space<vmem>>, vector<32x64xbf16>
    %cst_48 = arith.constant dense<0.000000e+00> : vector<16x64xf32>
    %169 = tpu.matmul %167, %168, %cst_48 {dimension_numbers = #tpu.dot_dimension_numbers<[1], [0], [0], [1], [0, 0, 1, 1], [], []>} : vector<16x32xbf16>, vector<32x64xbf16>, vector<16x64xf32> -> vector<16x64xf32>
    %c0_49 = arith.constant 0 : index
    %c256_50 = arith.constant 256 : index
    %170 = vector.load %arg6[%c0_49, %c256_50] : memref<1x544xf32, #tpu.memory_space<vmem>>, vector<1x64xf32>
    %171 = vector.broadcast %170 : vector<1x64xf32> to vector<16x64xf32>
    %172 = arith.addf %169, %171 : vector<16x64xf32>
    %cst_51 = arith.constant 0.000000e+00 : f32
    %173 = vector.broadcast %cst_51 : f32 to vector<16x64xf32>
    %174 = arith.maximumf %172, %173 : vector<16x64xf32>
    %175 = arith.truncf %174 : vector<16x64xf32> to vector<16x64xbf16>
    %c0_52 = arith.constant 0 : index
    %c0_53 = arith.constant 0 : index
    %176 = vector.load %arg5[%c0_52, %c0_53] : memref<64x32xbf16, #tpu.memory_space<vmem>>, vector<64x32xbf16>
    %cst_54 = arith.constant dense<0.000000e+00> : vector<16x32xf32>
    %177 = tpu.matmul %175, %176, %cst_54 {dimension_numbers = #tpu.dot_dimension_numbers<[1], [0], [0], [1], [0, 0, 1, 1], [], []>} : vector<16x64xbf16>, vector<64x32xbf16>, vector<16x32xf32> -> vector<16x32xf32>
    %c0_55 = arith.constant 0 : index
    %c320 = arith.constant 320 : index
    %178 = vector.load %arg6[%c0_55, %c320] : memref<1x544xf32, #tpu.memory_space<vmem>>, vector<1x32xf32>
    %179 = vector.broadcast %178 : vector<1x32xf32> to vector<16x32xf32>
    %180 = arith.addf %177, %179 : vector<16x32xf32>
    %181 = arith.addf %180, %166 : vector<16x32xf32>
    %cst_56 = arith.constant dense<0.000000e+00> : vector<16xf32>
    %182 = vector.multi_reduction <add>, %181, %cst_56 [1] : vector<16x32xf32> to vector<16xf32>
    %183 = vector.shape_cast %182 : vector<16xf32> to vector<16x1xf32>
    %cst_57 = arith.constant 3.200000e+01 : f32
    %184 = vector.broadcast %cst_57 : f32 to vector<16x1xf32>
    %185 = arith.divf %183, %184 : vector<16x1xf32>
    %186 = vector.broadcast %185 : vector<16x1xf32> to vector<16x32xf32>
    %187 = arith.subf %181, %186 : vector<16x32xf32>
    %188 = arith.mulf %187, %187 : vector<16x32xf32>
    %cst_58 = arith.constant dense<0.000000e+00> : vector<16xf32>
    %189 = vector.multi_reduction <add>, %188, %cst_58 [1] : vector<16x32xf32> to vector<16xf32>
    %190 = vector.shape_cast %189 : vector<16xf32> to vector<16x1xf32>
    %cst_59 = arith.constant 3.200000e+01 : f32
    %191 = vector.broadcast %cst_59 : f32 to vector<16x1xf32>
    %192 = arith.divf %190, %191 : vector<16x1xf32>
    %cst_60 = arith.constant 9.99999974E-6 : f32
    %193 = vector.broadcast %cst_60 : f32 to vector<16x1xf32>
    %194 = arith.addf %192, %193 : vector<16x1xf32>
    %195 = math.rsqrt %194 : vector<16x1xf32>
    %196 = vector.broadcast %195 : vector<16x1xf32> to vector<16x32xf32>
    %197 = arith.mulf %187, %196 : vector<16x32xf32>
    %c0_61 = arith.constant 0 : index
    %c480 = arith.constant 480 : index
    %198 = vector.load %arg6[%c0_61, %c480] : memref<1x544xf32, #tpu.memory_space<vmem>>, vector<1x32xf32>
    %199 = vector.broadcast %198 : vector<1x32xf32> to vector<16x32xf32>
    %200 = arith.mulf %197, %199 : vector<16x32xf32>
    %c0_62 = arith.constant 0 : index
    %c512 = arith.constant 512 : index
    %201 = vector.load %arg6[%c0_62, %c512] : memref<1x544xf32, #tpu.memory_space<vmem>>, vector<1x32xf32>
    %202 = vector.broadcast %201 : vector<1x32xf32> to vector<16x32xf32>
    %203 = arith.addf %200, %202 : vector<16x32xf32>
    %c0_63 = arith.constant 0 : index
    %c0_64 = arith.constant 0 : index
    %204 = vector.load %arg7[%c0_63, %c0_64] : memref<16x32xf32, #tpu.memory_space<vmem>>, vector<16x32xf32>
    tpu.vector_store %arg7[%c0_63, %c0_64], %203 {strides = array<i32>} : memref<16x32xf32, #tpu.memory_space<vmem>>, vector<16x32xf32>,
    return
  }
  func.func @transform_0(%arg0: i32) -> (i32, i32) {
    %c0_i32 = arith.constant 0 : i32
    %c0_i32_0 = arith.constant 0 : i32
    return %arg0, %c0_i32 : i32, i32
  }
  func.func @transform_1(%arg0: i32) -> (i32, i32) {
    %c0_i32 = arith.constant 0 : i32
    %c0_i32_0 = arith.constant 0 : i32
    return %arg0, %c0_i32 : i32, i32
  }
  func.func @transform_2(%arg0: i32) -> (i32, i32) {
    %c0_i32 = arith.constant 0 : i32
    %c0_i32_0 = arith.constant 0 : i32
    %c0_i32_1 = arith.constant 0 : i32
    return %c0_i32, %c0_i32_0 : i32, i32
  }
  func.func @transform_3(%arg0: i32) -> (i32, i32) {
    %c0_i32 = arith.constant 0 : i32
    %c0_i32_0 = arith.constant 0 : i32
    %c0_i32_1 = arith.constant 0 : i32
    return %c0_i32, %c0_i32_0 : i32, i32
  }
  func.func @transform_4(%arg0: i32) -> (i32, i32) {
    %c0_i32 = arith.constant 0 : i32
    %c0_i32_0 = arith.constant 0 : i32
    %c0_i32_1 = arith.constant 0 : i32
    return %c0_i32, %c0_i32_0 : i32, i32
  }
  func.func @transform_5(%arg0: i32) -> (i32, i32) {
    %c0_i32 = arith.constant 0 : i32
    %c0_i32_0 = arith.constant 0 : i32
    %c0_i32_1 = arith.constant 0 : i32
    return %c0_i32, %c0_i32_0 : i32, i32
  }
  func.func @transform_6(%arg0: i32) -> (i32, i32) {
    %c0_i32 = arith.constant 0 : i32
    %c0_i32_0 = arith.constant 0 : i32
    return %arg0, %c0_i32 : i32, i32
  }
}

</mosaic_0001>

<llo_original>
// kernel: tpu_custom_call.1
$region0: #{tpu_custom_call.1}
  #allocation0 [shape = 'u32[]', space=smem, size = 0x4, offset = 0x4, fixed_abs, tag = 'smem constant byte address 0x4 - core index']
  #allocation1 [shape = 'u32[144,128]{1,0:T(1,128)}', space=vmem, size = 0x12000, scoped, tag = 'internal scratch']
  %s0 = inlined_call_operand.hbm [shape: f32[16,32], index: 0, kind: input, shape index: {}]
  %s1 = inlined_call_operand.hbm [shape: f32[16,32], index: 1, kind: input, shape index: {}]
  %s2 = inlined_call_operand.hbm [shape: f32[8,8], index: 2, kind: input, shape index: {}]
  %s3 = inlined_call_operand.vmem [shape: bf16[32,320], index: 3, kind: input, shape index: {}]
  %s4 = inlined_call_operand.vmem [shape: bf16[64,32], index: 4, kind: input, shape index: {}]
  %s5 = inlined_call_operand.vmem [shape: f32[1,544], index: 5, kind: input, shape index: {}]
  %s6 = inlined_call_operand.hbm [shape: f32[16,32], index: 6, kind: output, shape index: {}]
  %s7 = sld [smem:[#allocation0]]
  $region46: #{tpu_custom_call.1} parent=0
    _
  %s9 = ssub.s32 1, %s7
  %s10 = scalar_select 0, %s9, %s7
  $region1: #{tpu_custom_call.1} parent=0
    #allocation2 [shape = 'u8[8192]{0}', space=vmem, size = 0x2000, scoped, tag = 'input window, operand 0, single buffered']
    #allocation3 [shape = 's32[1]{0}', space=sflag, size = 0x4, scoped, tag = 'scoped memory for tpu_custom_call.1']
    #allocation4 [shape = 's32[1]{0}', space=sflag, size = 0x4, scoped, tag = 'scoped memory for tpu_custom_call.1']
    #allocation5 [shape = 'u8[8192]{0}', space=vmem, size = 0x2000, scoped, tag = 'input window, operand 1, single buffered']
    #allocation6 [shape = 's32[1]{0}', space=sflag, size = 0x4, scoped, tag = 'scoped memory for tpu_custom_call.1']
    #allocation7 [shape = 'u8[4096]{0}', space=vmem, size = 0x1000, scoped, tag = 'input window, operand 2, single buffered']
    #allocation8 [shape = 'u8[8192]{0}', space=vmem, size = 0x2000, scoped, tag = 'output window, operand 0, single buffered']
    %11 = vsyncpa [#allocation3], 0
    %12 = vsyncpa [#allocation6], 0
    %13 = vsyncpa [#allocation4], 0
    // Predicated region
    $region2: #{tpu_custom_call.1} parent=1 // pred_check
      _
    $region3: #{tpu_custom_call.1} parent=1 // pred_check_branch
      %15 = sbr.rel (0) target = $region5
    $region4: #{tpu_custom_call.1} parent=1 // pred_region
      %s17 = ssub.s32 256, 256
      %18 = vsyncadd [#allocation3], %s17
      %s19 = sshll.u32 [#allocation2], 4
      %s20 = int_to_ptr.vmem [resolvable:$true] %s19
      %25 = dma.hbm_to_vmem [thread:$0]  %s0, 256, %s20, [#allocation3], 128, 128, 8
    $region5: #{tpu_custom_call.1} parent=1 // pred_fallthru
      _
    // Predicated region
    $region6: #{tpu_custom_call.1} parent=1 // pred_check
      _
    $region7: #{tpu_custom_call.1} parent=1 // pred_check_branch
      %27 = sbr.rel (0) target = $region9
    $region8: #{tpu_custom_call.1} parent=1 // pred_region
      %s29 = ssub.s32 256, 256
      %30 = vsyncadd [#allocation6], %s29
      %s31 = sshll.u32 [#allocation5], 4
      %s32 = int_to_ptr.vmem [resolvable:$true] %s31
      %37 = dma.hbm_to_vmem [thread:$0]  %s1, 256, %s32, [#allocation6], 128, 128, 8
    $region9: #{tpu_custom_call.1} parent=1 // pred_fallthru
      _
    // Predicated region
    $region10: #{tpu_custom_call.1} parent=1 // pred_check
      _
    $region11: #{tpu_custom_call.1} parent=1 // pred_check_branch
      %39 = sbr.rel (0) target = $region13
    $region12: #{tpu_custom_call.1} parent=1 // pred_region
      %s41 = ssub.s32 128, 128
      %42 = vsyncadd [#allocation6], %s41
      %s44 = sshll.u32 [#allocation7], 4
      %s45 = int_to_ptr.vmem [resolvable:$true] %s44
      %47 = dma.hbm_to_vmem [thread:$0]  %s2, 128, %s45, [#allocation6]
    $region13: #{tpu_custom_call.1} parent=1 // pred_fallthru
      _
    // Predicated region
    $region14: #{tpu_custom_call.1} parent=1 // pred_check
      _
    $region15: #{tpu_custom_call.1} parent=1 // pred_check_branch
      %49 = sbr.rel (0) target = $region17
    $region16: #{tpu_custom_call.1} parent=1 // pred_region
      _
    $region17: #{tpu_custom_call.1} parent=1 // pred_fallthru
      _
    // Predicated region
    $region18: #{tpu_custom_call.1} parent=1 // pred_check
      _
    $region19: #{tpu_custom_call.1} parent=1 // pred_check_branch
      %51 = sbr.rel (0) target = $region21
    $region20: #{tpu_custom_call.1} parent=1 // pred_region
      _
    $region21: #{tpu_custom_call.1} parent=1 // pred_fallthru
      _
    // Predicated region
    $region22: #{tpu_custom_call.1} parent=1 // pred_check
      _
    $region23: #{tpu_custom_call.1} parent=1 // pred_check_branch
      %53 = sbr.rel (0) target = $region25
    $region24: #{tpu_custom_call.1} parent=1 // pred_region
      _
    $region25: #{tpu_custom_call.1} parent=1 // pred_fallthru
      _
    // Predicated region
    $region26: #{tpu_custom_call.1} parent=1 // pred_check
      _
    $region27: #{tpu_custom_call.1} parent=1 // pred_check_branch
      %55 = sbr.rel (0) target = $region29
    $region28: #{tpu_custom_call.1} parent=1 // pred_region
      %56 = dma.done [#allocation3], 256
    $region29: #{tpu_custom_call.1} parent=1 // pred_fallthru
      _
    // Predicated region
    $region30: #{tpu_custom_call.1} parent=1 // pred_check
      _
    $region31: #{tpu_custom_call.1} parent=1 // pred_check_branch
      %58 = sbr.rel (0) target = $region33
    $region32: #{tpu_custom_call.1} parent=1 // pred_region
      %59 = dma.done [#allocation6], 256
    $region33: #{tpu_custom_call.1} parent=1 // pred_fallthru
      _
    // Predicated region
    $region34: #{tpu_custom_call.1} parent=1 // pred_check
      _
    $region35: #{tpu_custom_call.1} parent=1 // pred_check_branch
      %61 = sbr.rel (0) target = $region37
    $region36: #{tpu_custom_call.1} parent=1 // pred_region
      %62 = dma.done [#allocation6], 128
    $region37: #{tpu_custom_call.1} parent=1 // pred_fallthru
      _
    %v64 = vld [vmem:[#allocation2] sm:$0xff]
    %v65 = vld [vmem:[#allocation2 + $0x8] sm:$0xff]
    %v66 = vld [vmem:[#allocation5] sm:$0xff]
    %v67 = vld [vmem:[#allocation5 + $0x8] sm:$0xff]
    %v68 = vld [vmem:[#allocation7] sm:$0xff]
    %v69 = vpack.c.bf16 %v65, %v64
    %v70 = vld [vmem:[%s3] sm:$0xf]
    %v71 = vld [vmem:[%s3 + $0xc] sm:$0xf]
    %v72 = vld [vmem:[%s3 + $0x18] sm:$0xf]
    %v73 = vld [vmem:[%s3 + $0x24] sm:$0xf]
    %v74 = vld [vmem:[%s5] sm:$0x1]
    %v76 = vlaneseq
    %v77 = vshrl.u32 %v76, 7
    %v78 = vsub.s32 0, %v77
    %v79 = vrot.slane %v74, %v78
    %v85 = vunpack.c.l.b16 %v70
    %v86 = vunpack.c.l.b16 %v71
    %v87 = vunpack.c.l.b16 %v72
    %v88 = vunpack.c.l.b16 %v73
    %v89 = vpack.c.b16 %v86, %v85
    %v90 = vpack.c.b16 %v88, %v87
    %vm93 = vcmask 261120
    %v95 = vsel %vm93, %v69, 0
    %97 = vmatprep.subr.bf16.mxu0 0
    %98 = vmatpush1.bf16.msra.mxu0 0
    %99 = vmatprep.subr.bf16.mxu0 0
    %100 = vmatpush1.bf16.msra.mxu0 0
    %101 = vmatprep.subr.bf16.mxu0 0
    %102 = vmatpush1.bf16.msra.mxu0 0
    %103 = vmatprep.subr.bf16.mxu0 0
    %104 = vmatpush1.bf16.msra.mxu0 0
    %105 = vmatprep.subr.bf16.mxu0 0
    %106 = vmatpush1.bf16.msra.mxu0 0
    %107 = vmatprep.subr.bf16.mxu0 0
    %108 = vmatpush1.bf16.msra.mxu0 0
    %109 = vmatprep.subr.bf16.mxu0 0
    %110 = vmatpush1.bf16.msra.mxu0 %v90
    %111 = vmatprep.subr.bf16.mxu0 0
    %112 = vmatpush1.bf16.msra.mxu0 %v89
    %113 = vmatprep.subr.bf16.mxu0 0
    %114 = vmatpush2.bf16.msra.mxu0 0
    %115 = vmatprep.subr.bf16.mxu0 0
    %116 = vmatpush2.bf16.msra.mxu0 0
    %117 = vmatprep.subr.bf16.mxu0 0
    %118 = vmatpush2.bf16.msra.mxu0 0
    %119 = vmatprep.subr.bf16.mxu0 0
    %120 = vmatpush2.bf16.msra.mxu0 0
    %121 = vmatprep.subr.bf16.mxu0 0
    %122 = vmatpush2.bf16.msra.mxu0 0
    %123 = vmatprep.subr.bf16.mxu0 0
    %124 = vmatpush2.bf16.msra.mxu0 0
    %125 = vmatprep.subr.bf16.mxu0 0
    %126 = vmatpush2.bf16.msra.mxu0 0
    %127 = vmatprep.subr.bf16.mxu0 0
    %128 = vmatpush2.bf16.msra.mxu0 0
    %129 = vmatprep.mubr.bf16.mxu0 0
    %130 = vmatmul.mubr.bf16.gmra.mxu0 %v95
    %v131 = vpop.f32.mrf.mxu0
    %v132 = vadd.f32 %v79, %v131
    %v133 = vpop.f32.mrf.mxu0
    %v134 = vpop.f32.mrf.mxu0
    %v135 = vadd.f32 %v79, %v134
    %v136 = vpop.f32.mrf.mxu0
    %137 = vdwg.mxu0
    %v138 = vpack.c.bf16 %v132, %v132
    %v139 = vpack.c.bf16 %v135, %v135
    %142 = vrot.lane.b32.xlu0 %v138, 120
    %v143 = vpop.permute.xlu0 %142
    %144 = vrot.lane.b32.xlu0 %v139, 120
    %v145 = vpop.permute.xlu0 %144
    %146 = vrot.lane.b32.xlu0 %v138, 112
    %v147 = vpop.permute.xlu0 %146
    %148 = vrot.lane.b32.xlu0 %v139, 112
    %v149 = vpop.permute.xlu0 %148
    %150 = vrot.lane.b32.xlu0 %v138, 104
    %v151 = vpop.permute.xlu0 %150
    %152 = vrot.lane.b32.xlu0 %v139, 104
    %v153 = vpop.permute.xlu0 %152
    %154 = vrot.lane.b32.xlu0 %v138, 96
    %v155 = vpop.permute.xlu0 %154
    %vm156 = vcmask 64512
    %v158 = vsel %vm156, %v138, 0
    %v161 = vsel %vm156, %v155, 0
    %163 = vmatprep.subr.bf16.mxu0 0
    %164 = vmatpush1.bf16.xpose.msra.mxu0 0
    %165 = vmatprep.subr.bf16.mxu0 0
    %166 = vmatpush1.bf16.xpose.msra.mxu0 0
    %167 = vmatprep.subr.bf16.mxu0 0
    %168 = vmatpush1.bf16.xpose.msra.mxu0 0
    %169 = vmatprep.subr.bf16.mxu0 0
    %170 = vmatpush1.bf16.xpose.msra.mxu0 0
    %171 = vmatprep.subr.bf16.mxu0 0
    %172 = vmatpush1.bf16.xpose.msra.mxu0 0
    %173 = vmatprep.subr.bf16.mxu0 0
    %174 = vmatpush1.bf16.xpose.msra.mxu0 0
    %175 = vmatprep.subr.bf16.mxu0 0
    %176 = vmatpush1.bf16.xpose.msra.mxu0 0
    %177 = vmatprep.subr.bf16.mxu0 0
    %178 = vmatpush1.bf16.xpose.msra.mxu0 %v161
    %179 = vmatprep.subr.bf16.mxu0 0
    %180 = vmatpush2.bf16.xpose.msra.mxu0 0
    %181 = vmatprep.subr.bf16.mxu0 0
    %182 = vmatpush2.bf16.xpose.msra.mxu0 0
    %183 = vmatprep.subr.bf16.mxu0 0
    %184 = vmatpush2.bf16.xpose.msra.mxu0 0
    %185 = vmatprep.subr.bf16.mxu0 0
    %186 = vmatpush2.bf16.xpose.msra.mxu0 0
    %187 = vmatprep.subr.bf16.mxu0 0
    %188 = vmatpush2.bf16.xpose.msra.mxu0 0
    %189 = vmatprep.subr.bf16.mxu0 0
    %190 = vmatpush2.bf16.xpose.msra.mxu0 0
    %191 = vmatprep.subr.bf16.mxu0 0
    %192 = vmatpush2.bf16.xpose.msra.mxu0 0
    %193 = vmatprep.subr.bf16.mxu0 0
    %194 = vmatpush2.bf16.xpose.msra.mxu0 0
    %195 = vmatprep.mubr.bf16.mxu0 0
    %196 = vmatmul.mubr.bf16.gmra.mxu0 %v158
    %v197 = vpop.f32.mrf.mxu0
    %v198 = vadd.f32 %v68, %v197
    %v199 = vpop.f32.mrf.mxu0
    %v200 = vpop.f32.mrf.mxu0
    %v201 = vpop.f32.mrf.mxu0
    %202 = vdwg.mxu0
    %203 = vrot.lane.b32.xlu0 %v139, 96
    %v204 = vpop.permute.xlu0 %203
    %v206 = vsel %vm156, %v139, 0
    %v209 = vsel %vm156, %v204, 0
    %211 = vmatprep.subr.bf16.mxu0 0
    %212 = vmatpush1.bf16.xpose.msra.mxu0 0
    %213 = vmatprep.subr.bf16.mxu0 0
    %214 = vmatpush1.bf16.xpose.msra.mxu0 0
    %215 = vmatprep.subr.bf16.mxu0 0
    %216 = vmatpush1.bf16.xpose.msra.mxu0 0
    %217 = vmatprep.subr.bf16.mxu0 0
    %218 = vmatpush1.bf16.xpose.msra.mxu0 0
    %219 = vmatprep.subr.bf16.mxu0 0
    %220 = vmatpush1.bf16.xpose.msra.mxu0 0
    %221 = vmatprep.subr.bf16.mxu0 0
    %222 = vmatpush1.bf16.xpose.msra.mxu0 0
    %223 = vmatprep.subr.bf16.mxu0 0
    %224 = vmatpush1.bf16.xpose.msra.mxu0 0
    %225 = vmatprep.subr.bf16.mxu0 0
    %226 = vmatpush1.bf16.xpose.msra.mxu0 %v209
    %227 = vmatprep.subr.bf16.mxu0 0
    %228 = vmatpush2.bf16.xpose.msra.mxu0 0
    %229 = vmatprep.subr.bf16.mxu0 0
    %230 = vmatpush2.bf16.xpose.msra.mxu0 0
    %231 = vmatprep.subr.bf16.mxu0 0
    %232 = vmatpush2.bf16.xpose.msra.mxu0 0
    %233 = vmatprep.subr.bf16.mxu0 0
    %234 = vmatpush2.bf16.xpose.msra.mxu0 0
    %235 = vmatprep.subr.bf16.mxu0 0
    %236 = vmatpush2.bf16.xpose.msra.mxu0 0
    %237 = vmatprep.subr.bf16.mxu0 0
    %238 = vmatpush2.bf16.xpose.msra.mxu0 0
    %239 = vmatprep.subr.bf16.mxu0 0
    %240 = vmatpush2.bf16.xpose.msra.mxu0 0
    %241 = vmatprep.subr.bf16.mxu0 0
    %242 = vmatpush2.bf16.xpose.msra.mxu0 0
    %243 = vmatprep.mubr.bf16.mxu0 0
    %244 = vmatmul.mubr.bf16.gmra.mxu0 %v206
    %v245 = vpop.f32.mrf.mxu0
    %v246 = vadd.f32 %v68, %v245
    %v247 = vpop.f32.mrf.mxu0
    %v248 = vpop.f32.mrf.mxu0
    %v249 = vpop.f32.mrf.mxu0
    %250 = vdwg.mxu0
    %251 = vrot.lane.b32.xlu0 %v143, 96
    %v252 = vpop.permute.xlu0 %251
    %v254 = vsel %vm156, %v143, 0
    %v257 = vsel %vm156, %v252, 0
    %259 = vmatprep.subr.bf16.mxu0 0
    %260 = vmatpush1.bf16.xpose.msra.mxu0 0
    %261 = vmatprep.subr.bf16.mxu0 0
    %262 = vmatpush1.bf16.xpose.msra.mxu0 0
    %263 = vmatprep.subr.bf16.mxu0 0
    %264 = vmatpush1.bf16.xpose.msra.mxu0 0
    %265 = vmatprep.subr.bf16.mxu0 0
    %266 = vmatpush1.bf16.xpose.msra.mxu0 0
    %267 = vmatprep.subr.bf16.mxu0 0
    %268 = vmatpush1.bf16.xpose.msra.mxu0 0
    %269 = vmatprep.subr.bf16.mxu0 0
    %270 = vmatpush1.bf16.xpose.msra.mxu0 0
    %271 = vmatprep.subr.bf16.mxu0 0
    %272 = vmatpush1.bf16.xpose.msra.mxu0 0
    %273 = vmatprep.subr.bf16.mxu0 0
    %274 = vmatpush1.bf16.xpose.msra.mxu0 %v257
    %275 = vmatprep.subr.bf16.mxu0 0
    %276 = vmatpush2.bf16.xpose.msra.mxu0 0
    %277 = vmatprep.subr.bf16.mxu0 0
    %278 = vmatpush2.bf16.xpose.msra.mxu0 0
    %279 = vmatprep.subr.bf16.mxu0 0
    %280 = vmatpush2.bf16.xpose.msra.mxu0 0
    %281 = vmatprep.subr.bf16.mxu0 0
    %282 = vmatpush2.bf16.xpose.msra.mxu0 0
    %283 = vmatprep.subr.bf16.mxu0 0
    %284 = vmatpush2.bf16.xpose.msra.mxu0 0
    %285 = vmatprep.subr.bf16.mxu0 0
    %286 = vmatpush2.bf16.xpose.msra.mxu0 0
    %287 = vmatprep.subr.bf16.mxu0 0
    %288 = vmatpush2.bf16.xpose.msra.mxu0 0
    %289 = vmatprep.subr.bf16.mxu0 0
    %290 = vmatpush2.bf16.xpose.msra.mxu0 0
    %291 = vmatprep.mubr.bf16.mxu0 0
    %292 = vmatmul.mubr.bf16.gmra.mxu0 %v254
    %v293 = vpop.f32.mrf.mxu0
    %v294 = vadd.f32 %v68, %v293
    %v295 = vpop.f32.mrf.mxu0
    %v296 = vpop.f32.mrf.mxu0
    %v297 = vpop.f32.mrf.mxu0
    %298 = vdwg.mxu0
    %299 = vrot.lane.b32.xlu0 %v145, 96
    %v300 = vpop.permute.xlu0 %299
    %v302 = vsel %vm156, %v145, 0
    %v305 = vsel %vm156, %v300, 0
    %307 = vmatprep.subr.bf16.mxu0 0
    %308 = vmatpush1.bf16.xpose.msra.mxu0 0
    %309 = vmatprep.subr.bf16.mxu0 0
    %310 = vmatpush1.bf16.xpose.msra.mxu0 0
    %311 = vmatprep.subr.bf16.mxu0 0
    %312 = vmatpush1.bf16.xpose.msra.mxu0 0
    %313 = vmatprep.subr.bf16.mxu0 0
    %314 = vmatpush1.bf16.xpose.msra.mxu0 0
    %315 = vmatprep.subr.bf16.mxu0 0
    %316 = vmatpush1.bf16.xpose.msra.mxu0 0
    %317 = vmatprep.subr.bf16.mxu0 0
    %318 = vmatpush1.bf16.xpose.msra.mxu0 0
    %319 = vmatprep.subr.bf16.mxu0 0
    %320 = vmatpush1.bf16.xpose.msra.mxu0 0
    %321 = vmatprep.subr.bf16.mxu0 0
    %322 = vmatpush1.bf16.xpose.msra.mxu0 %v305
    %323 = vmatprep.subr.bf16.mxu0 0
    %324 = vmatpush2.bf16.xpose.msra.mxu0 0
    %325 = vmatprep.subr.bf16.mxu0 0
    %326 = vmatpush2.bf16.xpose.msra.mxu0 0
    %327 = vmatprep.subr.bf16.mxu0 0
    %328 = vmatpush2.bf16.xpose.msra.mxu0 0
    %329 = vmatprep.subr.bf16.mxu0 0
    %330 = vmatpush2.bf16.xpose.msra.mxu0 0
    %331 = vmatprep.subr.bf16.mxu0 0
    %332 = vmatpush2.bf16.xpose.msra.mxu0 0
    %333 = vmatprep.subr.bf16.mxu0 0
    %334 = vmatpush2.bf16.xpose.msra.mxu0 0
    %335 = vmatprep.subr.bf16.mxu0 0
    %336 = vmatpush2.bf16.xpose.msra.mxu0 0
    %337 = vmatprep.subr.bf16.mxu0 0
    %338 = vmatpush2.bf16.xpose.msra.mxu0 0
    %339 = vmatprep.mubr.bf16.mxu0 0
    %340 = vmatmul.mubr.bf16.gmra.mxu0 %v302
    %v341 = vpop.f32.mrf.mxu0
    %v342 = vadd.f32 %v68, %v341
    %v343 = vpop.f32.mrf.mxu0
    %v344 = vpop.f32.mrf.mxu0
    %v345 = vpop.f32.mrf.mxu0
    %346 = vdwg.mxu0
    %347 = vrot.lane.b32.xlu0 %v147, 96
    %v348 = vpop.permute.xlu0 %347
    %v350 = vsel %vm156, %v147, 0
    %v353 = vsel %vm156, %v348, 0
    %355 = vmatprep.subr.bf16.mxu0 0
    %356 = vmatpush1.bf16.xpose.msra.mxu0 0
    %357 = vmatprep.subr.bf16.mxu0 0
    %358 = vmatpush1.bf16.xpose.msra.mxu0 0
    %359 = vmatprep.subr.bf16.mxu0 0
    %360 = vmatpush1.bf16.xpose.msra.mxu0 0
    %361 = vmatprep.subr.bf16.mxu0 0
    %362 = vmatpush1.bf16.xpose.msra.mxu0 0
    %363 = vmatprep.subr.bf16.mxu0 0
    %364 = vmatpush1.bf16.xpose.msra.mxu0 0
    %365 = vmatprep.subr.bf16.mxu0 0
    %366 = vmatpush1.bf16.xpose.msra.mxu0 0
    %367 = vmatprep.subr.bf16.mxu0 0
    %368 = vmatpush1.bf16.xpose.msra.mxu0 0
    %369 = vmatprep.subr.bf16.mxu0 0
    %370 = vmatpush1.bf16.xpose.msra.mxu0 %v353
    %371 = vmatprep.subr.bf16.mxu0 0
    %372 = vmatpush2.bf16.xpose.msra.mxu0 0
    %373 = vmatprep.subr.bf16.mxu0 0
    %374 = vmatpush2.bf16.xpose.msra.mxu0 0
    %375 = vmatprep.subr.bf16.mxu0 0
    %376 = vmatpush2.bf16.xpose.msra.mxu0 0
    %377 = vmatprep.subr.bf16.mxu0 0
    %378 = vmatpush2.bf16.xpose.msra.mxu0 0
    %379 = vmatprep.subr.bf16.mxu0 0
    %380 = vmatpush2.bf16.xpose.msra.mxu0 0
    %381 = vmatprep.subr.bf16.mxu0 0
    %382 = vmatpush2.bf16.xpose.msra.mxu0 0
    %383 = vmatprep.subr.bf16.mxu0 0
    %384 = vmatpush2.bf16.xpose.msra.mxu0 0
    %385 = vmatprep.subr.bf16.mxu0 0
    %386 = vmatpush2.bf16.xpose.msra.mxu0 0
    %387 = vmatprep.mubr.bf16.mxu0 0
    %388 = vmatmul.mubr.bf16.gmra.mxu0 %v350
    %v389 = vpop.f32.mrf.mxu0
    %v390 = vadd.f32 %v68, %v389
    %v391 = vpop.f32.mrf.mxu0
    %v392 = vpop.f32.mrf.mxu0
    %v393 = vpop.f32.mrf.mxu0
    %394 = vdwg.mxu0
    %395 = vrot.lane.b32.xlu0 %v149, 96
    %v396 = vpop.permute.xlu0 %395
    %v398 = vsel %vm156, %v149, 0
    %v401 = vsel %vm156, %v396, 0
    %403 = vmatprep.subr.bf16.mxu0 0
    %404 = vmatpush1.bf16.xpose.msra.mxu0 0
    %405 = vmatprep.subr.bf16.mxu0 0
    %406 = vmatpush1.bf16.xpose.msra.mxu0 0
    %407 = vmatprep.subr.bf16.mxu0 0
    %408 = vmatpush1.bf16.xpose.msra.mxu0 0
    %409 = vmatprep.subr.bf16.mxu0 0
    %410 = vmatpush1.bf16.xpose.msra.mxu0 0
    %411 = vmatprep.subr.bf16.mxu0 0
    %412 = vmatpush1.bf16.xpose.msra.mxu0 0
    %413 = vmatprep.subr.bf16.mxu0 0
    %414 = vmatpush1.bf16.xpose.msra.mxu0 0
    %415 = vmatprep.subr.bf16.mxu0 0
    %416 = vmatpush1.bf16.xpose.msra.mxu0 0
    %417 = vmatprep.subr.bf16.mxu0 0
    %418 = vmatpush1.bf16.xpose.msra.mxu0 %v401
    %419 = vmatprep.subr.bf16.mxu0 0
    %420 = vmatpush2.bf16.xpose.msra.mxu0 0
    %421 = vmatprep.subr.bf16.mxu0 0
    %422 = vmatpush2.bf16.xpose.msra.mxu0 0
    %423 = vmatprep.subr.bf16.mxu0 0
    %424 = vmatpush2.bf16.xpose.msra.mxu0 0
    %425 = vmatprep.subr.bf16.mxu0 0
    %426 = vmatpush2.bf16.xpose.msra.mxu0 0
    %427 = vmatprep.subr.bf16.mxu0 0
    %428 = vmatpush2.bf16.xpose.msra.mxu0 0
    %429 = vmatprep.subr.bf16.mxu0 0
    %430 = vmatpush2.bf16.xpose.msra.mxu0 0
    %431 = vmatprep.subr.bf16.mxu0 0
    %432 = vmatpush2.bf16.xpose.msra.mxu0 0
    %433 = vmatprep.subr.bf16.mxu0 0
    %434 = vmatpush2.bf16.xpose.msra.mxu0 0
    %435 = vmatprep.mubr.bf16.mxu0 0
    %436 = vmatmul.mubr.bf16.gmra.mxu0 %v398
    %v437 = vpop.f32.mrf.mxu0
    %v438 = vadd.f32 %v68, %v437
    %v439 = vpop.f32.mrf.mxu0
    %v440 = vpop.f32.mrf.mxu0
    %v441 = vpop.f32.mrf.mxu0
    %442 = vdwg.mxu0
    %443 = vrot.lane.b32.xlu0 %v151, 96
    %v444 = vpop.permute.xlu0 %443
    %v446 = vsel %vm156, %v151, 0
    %v449 = vsel %vm156, %v444, 0
    %451 = vmatprep.subr.bf16.mxu0 0
    %452 = vmatpush1.bf16.xpose.msra.mxu0 0
    %453 = vmatprep.subr.bf16.mxu0 0
    %454 = vmatpush1.bf16.xpose.msra.mxu0 0
    %455 = vmatprep.subr.bf16.mxu0 0
    %456 = vmatpush1.bf16.xpose.msra.mxu0 0
    %457 = vmatprep.subr.bf16.mxu0 0
    %458 = vmatpush1.bf16.xpose.msra.mxu0 0
    %459 = vmatprep.subr.bf16.mxu0 0
    %460 = vmatpush1.bf16.xpose.msra.mxu0 0
    %461 = vmatprep.subr.bf16.mxu0 0
    %462 = vmatpush1.bf16.xpose.msra.mxu0 0
    %463 = vmatprep.subr.bf16.mxu0 0
    %464 = vmatpush1.bf16.xpose.msra.mxu0 0
    %465 = vmatprep.subr.bf16.mxu0 0
    %466 = vmatpush1.bf16.xpose.msra.mxu0 %v449
    %467 = vmatprep.subr.bf16.mxu0 0
    %468 = vmatpush2.bf16.xpose.msra.mxu0 0
    %469 = vmatprep.subr.bf16.mxu0 0
    %470 = vmatpush2.bf16.xpose.msra.mxu0 0
    %471 = vmatprep.subr.bf16.mxu0 0
    %472 = vmatpush2.bf16.xpose.msra.mxu0 0
    %473 = vmatprep.subr.bf16.mxu0 0
    %474 = vmatpush2.bf16.xpose.msra.mxu0 0
    %475 = vmatprep.subr.bf16.mxu0 0
    %476 = vmatpush2.bf16.xpose.msra.mxu0 0
    %477 = vmatprep.subr.bf16.mxu0 0
    %478 = vmatpush2.bf16.xpose.msra.mxu0 0
    %479 = vmatprep.subr.bf16.mxu0 0
    %480 = vmatpush2.bf16.xpose.msra.mxu0 0
    %481 = vmatprep.subr.bf16.mxu0 0
    %482 = vmatpush2.bf16.xpose.msra.mxu0 0
    %483 = vmatprep.mubr.bf16.mxu0 0
    %484 = vmatmul.mubr.bf16.gmra.mxu0 %v446
    %v485 = vpop.f32.mrf.mxu0
    %v486 = vadd.f32 %v68, %v485
    %v487 = vpop.f32.mrf.mxu0
    %v488 = vpop.f32.mrf.mxu0
    %v489 = vpop.f32.mrf.mxu0
    %490 = vdwg.mxu0
    %491 = vrot.lane.b32.xlu0 %v153, 96
    %v492 = vpop.permute.xlu0 %491
    %v494 = vsel %vm156, %v153, 0
    %v497 = vsel %vm156, %v492, 0
    %499 = vmatprep.subr.bf16.mxu0 0
    %500 = vmatpush1.bf16.xpose.msra.mxu0 0
    %501 = vmatprep.subr.bf16.mxu0 0
    %502 = vmatpush1.bf16.xpose.msra.mxu0 0
    %503 = vmatprep.subr.bf16.mxu0 0
    %504 = vmatpush1.bf16.xpose.msra.mxu0 0
    %505 = vmatprep.subr.bf16.mxu0 0
    %506 = vmatpush1.bf16.xpose.msra.mxu0 0
    %507 = vmatprep.subr.bf16.mxu0 0
    %508 = vmatpush1.bf16.xpose.msra.mxu0 0
    %509 = vmatprep.subr.bf16.mxu0 0
    %510 = vmatpush1.bf16.xpose.msra.mxu0 0
    %511 = vmatprep.subr.bf16.mxu0 0
    %512 = vmatpush1.bf16.xpose.msra.mxu0 0
    %513 = vmatprep.subr.bf16.mxu0 0
    %514 = vmatpush1.bf16.xpose.msra.mxu0 %v497
    %515 = vmatprep.subr.bf16.mxu0 0
    %516 = vmatpush2.bf16.xpose.msra.mxu0 0
    %517 = vmatprep.subr.bf16.mxu0 0
    %518 = vmatpush2.bf16.xpose.msra.mxu0 0
    %519 = vmatprep.subr.bf16.mxu0 0
    %520 = vmatpush2.bf16.xpose.msra.mxu0 0
    %521 = vmatprep.subr.bf16.mxu0 0
    %522 = vmatpush2.bf16.xpose.msra.mxu0 0
    %523 = vmatprep.subr.bf16.mxu0 0
    %524 = vmatpush2.bf16.xpose.msra.mxu0 0
    %525 = vmatprep.subr.bf16.mxu0 0
    %526 = vmatpush2.bf16.xpose.msra.mxu0 0
    %527 = vmatprep.subr.bf16.mxu0 0
    %528 = vmatpush2.bf16.xpose.msra.mxu0 0
    %529 = vmatprep.subr.bf16.mxu0 0
    %530 = vmatpush2.bf16.xpose.msra.mxu0 0
    %531 = vmatprep.mubr.bf16.mxu0 0
    %532 = vmatmul.mubr.bf16.gmra.mxu0 %v494
    %v533 = vpop.f32.mrf.mxu0
    %v534 = vadd.f32 %v68, %v533
    %v535 = vpop.f32.mrf.mxu0
    %v536 = vpop.f32.mrf.mxu0
    %v537 = vpop.f32.mrf.mxu0
    %538 = vdwg.mxu0
    %v539 = vsel %vm156, %v198, -inf
    %540 = vmax.xlane.f32.xlu0 %v539
    %v541 = vpop.xlane.xlu0 %540
    %v542 = vsel %vm156, %v246, -inf
    %543 = vmax.xlane.f32.xlu0 %v542
    %v544 = vpop.xlane.xlu0 %543
    %v545 = vsel %vm156, %v294, -inf
    %546 = vmax.xlane.f32.xlu0 %v545
    %v547 = vpop.xlane.xlu0 %546
    %v548 = vsel %vm156, %v342, -inf
    %549 = vmax.xlane.f32.xlu0 %v548
    %v550 = vpop.xlane.xlu0 %549
    %v551 = vsel %vm156, %v390, -inf
    %552 = vmax.xlane.f32.xlu0 %v551
    %v553 = vpop.xlane.xlu0 %552
    %v554 = vsel %vm156, %v438, -inf
    %555 = vmax.xlane.f32.xlu0 %v554
    %v556 = vpop.xlane.xlu0 %555
    %v557 = vsel %vm156, %v486, -inf
    %558 = vmax.xlane.f32.xlu0 %v557
    %v559 = vpop.xlane.xlu0 %558
    %v560 = vsel %vm156, %v534, -inf
    %561 = vmax.xlane.f32.xlu0 %v560
    %v562 = vpop.xlane.xlu0 %561
    %v563 = vsub.f32 %v198, %v541
    %v564 = vsub.f32 %v246, %v544
    %v565 = vsub.f32 %v294, %v547
    %v566 = vsub.f32 %v342, %v550
    %v567 = vsub.f32 %v390, %v553
    %v568 = vsub.f32 %v438, %v556
    %v569 = vsub.f32 %v486, %v559
    %v570 = vsub.f32 %v534, %v562
    %v571 = vmul.f32 %v563, 1.442695
    %v572 = vpow.pop %v571
    %v573 = vmul.f32 %v564, 1.442695
    %v574 = vpow.pop %v573
    %v575 = vmul.f32 %v565, 1.442695
    %v576 = vpow.pop %v575
    %v577 = vmul.f32 %v566, 1.442695
    %v578 = vpow.pop %v577
    %v579 = vmul.f32 %v567, 1.442695
    %v580 = vpow.pop %v579
    %v581 = vmul.f32 %v568, 1.442695
    %v582 = vpow.pop %v581
    %v583 = vmul.f32 %v569, 1.442695
    %v584 = vpow.pop %v583
    %v585 = vmul.f32 %v570, 1.442695
    %v586 = vpow.pop %v585
    %v587 = vsel %vm156, %v572, 0.0
    %588 = vadd.xlane.f32.xlu0 %v587
    %v589 = vpop.xlane.xlu0 %588
    %v590 = vsel %vm156, %v574, 0.0
    %591 = vadd.xlane.f32.xlu0 %v590
    %v592 = vpop.xlane.xlu0 %591
    %v593 = vsel %vm156, %v576, 0.0
    %594 = vadd.xlane.f32.xlu0 %v593
    %v595 = vpop.xlane.xlu0 %594
    %v596 = vsel %vm156, %v578, 0.0
    %597 = vadd.xlane.f32.xlu0 %v596
    %v598 = vpop.xlane.xlu0 %597
    %v599 = vsel %vm156, %v580, 0.0
    %600 = vadd.xlane.f32.xlu0 %v599
    %v601 = vpop.xlane.xlu0 %600
    %v602 = vsel %vm156, %v582, 0.0
    %603 = vadd.xlane.f32.xlu0 %v602
    %v604 = vpop.xlane.xlu0 %603
    %v605 = vsel %vm156, %v584, 0.0
    %606 = vadd.xlane.f32.xlu0 %v605
    %v607 = vpop.xlane.xlu0 %606
    %v608 = vsel %vm156, %v586, 0.0
    %609 = vadd.xlane.f32.xlu0 %v608
    %v610 = vpop.xlane.xlu0 %609
    %v611 = vrcp.pop %v589
    %v612 = vrcp.pop %v592
    %v613 = vrcp.pop %v595
    %v614 = vrcp.pop %v598
    %v615 = vrcp.pop %v601
    %v616 = vrcp.pop %v604
    %v617 = vrcp.pop %v607
    %v618 = vrcp.pop %v610
    %v619 = vmul.f32 %v572, %v611
    %v620 = vmul.f32 %v574, %v612
    %v621 = vmul.f32 %v576, %v613
    %v622 = vmul.f32 %v578, %v614
    %v623 = vmul.f32 %v580, %v615
    %v624 = vmul.f32 %v582, %v616
    %v625 = vmul.f32 %v584, %v617
    %v626 = vmul.f32 %v586, %v618
    %v627 = vpack.c.bf16 %v619, %v619
    %v628 = vpack.c.bf16 %v620, %v620
    %v629 = vpack.c.bf16 %v621, %v621
    %v630 = vpack.c.bf16 %v622, %v622
    %v631 = vpack.c.bf16 %v623, %v623
    %v632 = vpack.c.bf16 %v624, %v624
    %v633 = vpack.c.bf16 %v625, %v625
    %v634 = vpack.c.bf16 %v626, %v626
    %635 = vrot.lane.b32.xlu0 %v138, 64
    %v636 = vpop.permute.xlu0 %635
    %v638 = vsel %vm156, %v627, 0
    %vm640 = vcmask 1043456
    %v642 = vsel %vm640, %v636, 0
    %644 = vmatprep.subr.bf16.mxu0 0
    %645 = vmatpush1.bf16.msra.mxu0 0
    %646 = vmatprep.subr.bf16.mxu0 0
    %647 = vmatpush1.bf16.msra.mxu0 0
    %648 = vmatprep.subr.bf16.mxu0 0
    %649 = vmatpush1.bf16.msra.mxu0 0
    %650 = vmatprep.subr.bf16.mxu0 0
    %651 = vmatpush1.bf16.msra.mxu0 0
    %652 = vmatprep.subr.bf16.mxu0 0
    %653 = vmatpush1.bf16.msra.mxu0 0
    %654 = vmatprep.subr.bf16.mxu0 0
    %655 = vmatpush1.bf16.msra.mxu0 0
    %656 = vmatprep.subr.bf16.mxu0 0
    %657 = vmatpush1.bf16.msra.mxu0 0
    %658 = vmatprep.subr.bf16.mxu0 0
    %659 = vmatpush1.bf16.msra.mxu0 %v642
    %660 = vmatprep.subr.bf16.mxu0 0
    %661 = vmatpush2.bf16.msra.mxu0 0
    %662 = vmatprep.subr.bf16.mxu0 0
    %663 = vmatpush2.bf16.msra.mxu0 0
    %664 = vmatprep.subr.bf16.mxu0 0
    %665 = vmatpush2.bf16.msra.mxu0 0
    %666 = vmatprep.subr.bf16.mxu0 0
    %667 = vmatpush2.bf16.msra.mxu0 0
    %668 = vmatprep.subr.bf16.mxu0 0
    %669 = vmatpush2.bf16.msra.mxu0 0
    %670 = vmatprep.subr.bf16.mxu0 0
    %671 = vmatpush2.bf16.msra.mxu0 0
    %672 = vmatprep.subr.bf16.mxu0 0
    %673 = vmatpush2.bf16.msra.mxu0 0
    %674 = vmatprep.subr.bf16.mxu0 0
    %675 = vmatpush2.bf16.msra.mxu0 0
    %676 = vmatprep.mubr.bf16.mxu0 0
    %677 = vmatmul.mubr.bf16.gmra.mxu0 %v638
    %v678 = vpop.f32.mrf.mxu0
    %v679 = vadd.f32 0.0, %v678
    %v680 = vpop.f32.mrf.mxu0
    %v681 = vpop.f32.mrf.mxu0
    %v682 = vpop.f32.mrf.mxu0
    %683 = vdwg.mxu0
    %684 = vrot.lane.b32.xlu0 %v139, 64
    %v685 = vpop.permute.xlu0 %684
    %v687 = vsel %vm156, %v628, 0
    %v690 = vsel %vm640, %v685, 0
    %692 = vmatprep.subr.bf16.mxu0 0
    %693 = vmatpush1.bf16.msra.mxu0 0
    %694 = vmatprep.subr.bf16.mxu0 0
    %695 = vmatpush1.bf16.msra.mxu0 0
    %696 = vmatprep.subr.bf16.mxu0 0
    %697 = vmatpush1.bf16.msra.mxu0 0
    %698 = vmatprep.subr.bf16.mxu0 0
    %699 = vmatpush1.bf16.msra.mxu0 0
    %700 = vmatprep.subr.bf16.mxu0 0
    %701 = vmatpush1.bf16.msra.mxu0 0
    %702 = vmatprep.subr.bf16.mxu0 0
    %703 = vmatpush1.bf16.msra.mxu0 0
    %704 = vmatprep.subr.bf16.mxu0 0
    %705 = vmatpush1.bf16.msra.mxu0 0
    %706 = vmatprep.subr.bf16.mxu0 0
    %707 = vmatpush1.bf16.msra.mxu0 %v690
    %708 = vmatprep.subr.bf16.mxu0 0
    %709 = vmatpush2.bf16.msra.mxu0 0
    %710 = vmatprep.subr.bf16.mxu0 0
    %711 = vmatpush2.bf16.msra.mxu0 0
    %712 = vmatprep.subr.bf16.mxu0 0
    %713 = vmatpush2.bf16.msra.mxu0 0
    %714 = vmatprep.subr.bf16.mxu0 0
    %715 = vmatpush2.bf16.msra.mxu0 0
    %716 = vmatprep.subr.bf16.mxu0 0
    %717 = vmatpush2.bf16.msra.mxu0 0
    %718 = vmatprep.subr.bf16.mxu0 0
    %719 = vmatpush2.bf16.msra.mxu0 0
    %720 = vmatprep.subr.bf16.mxu0 0
    %721 = vmatpush2.bf16.msra.mxu0 0
    %722 = vmatprep.subr.bf16.mxu0 0
    %723 = vmatpush2.bf16.msra.mxu0 0
    %724 = vmatprep.mubr.bf16.mxu0 0
    %725 = vmatmul.mubr.bf16.gmra.mxu0 %v687
    %v726 = vpop.f32.mrf.mxu0
    %v727 = vadd.f32 0.0, %v726
    %v728 = vpop.f32.mrf.mxu0
    %v729 = vpop.f32.mrf.mxu0
    %v730 = vpop.f32.mrf.mxu0
    %731 = vdwg.mxu0
    %732 = vrot.lane.b32.xlu0 %v143, 64
    %v733 = vpop.permute.xlu0 %732
    %v735 = vsel %vm156, %v629, 0
    %v738 = vsel %vm640, %v733, 0
    %740 = vmatprep.subr.bf16.mxu0 0
    %741 = vmatpush1.bf16.msra.mxu0 0
    %742 = vmatprep.subr.bf16.mxu0 0
    %743 = vmatpush1.bf16.msra.mxu0 0
    %744 = vmatprep.subr.bf16.mxu0 0
    %745 = vmatpush1.bf16.msra.mxu0 0
    %746 = vmatprep.subr.bf16.mxu0 0
    %747 = vmatpush1.bf16.msra.mxu0 0
    %748 = vmatprep.subr.bf16.mxu0 0
    %749 = vmatpush1.bf16.msra.mxu0 0
    %750 = vmatprep.subr.bf16.mxu0 0
    %751 = vmatpush1.bf16.msra.mxu0 0
    %752 = vmatprep.subr.bf16.mxu0 0
    %753 = vmatpush1.bf16.msra.mxu0 0
    %754 = vmatprep.subr.bf16.mxu0 0
    %755 = vmatpush1.bf16.msra.mxu0 %v738
    %756 = vmatprep.subr.bf16.mxu0 0
    %757 = vmatpush2.bf16.msra.mxu0 0
    %758 = vmatprep.subr.bf16.mxu0 0
    %759 = vmatpush2.bf16.msra.mxu0 0
    %760 = vmatprep.subr.bf16.mxu0 0
    %761 = vmatpush2.bf16.msra.mxu0 0
    %762 = vmatprep.subr.bf16.mxu0 0
    %763 = vmatpush2.bf16.msra.mxu0 0
    %764 = vmatprep.subr.bf16.mxu0 0
    %765 = vmatpush2.bf16.msra.mxu0 0
    %766 = vmatprep.subr.bf16.mxu0 0
    %767 = vmatpush2.bf16.msra.mxu0 0
    %768 = vmatprep.subr.bf16.mxu0 0
    %769 = vmatpush2.bf16.msra.mxu0 0
    %770 = vmatprep.subr.bf16.mxu0 0
    %771 = vmatpush2.bf16.msra.mxu0 0
    %772 = vmatprep.mubr.bf16.mxu0 0
    %773 = vmatmul.mubr.bf16.gmra.mxu0 %v735
    %v774 = vpop.f32.mrf.mxu0
    %v775 = vadd.f32 0.0, %v774
    %v776 = vpop.f32.mrf.mxu0
    %v777 = vpop.f32.mrf.mxu0
    %v778 = vpop.f32.mrf.mxu0
    %779 = vdwg.mxu0
    %780 = vrot.lane.b32.xlu0 %v145, 64
    %v781 = vpop.permute.xlu0 %780
    %v783 = vsel %vm156, %v630, 0
    %v786 = vsel %vm640, %v781, 0
    %788 = vmatprep.subr.bf16.mxu0 0
    %789 = vmatpush1.bf16.msra.mxu0 0
    %790 = vmatprep.subr.bf16.mxu0 0
    %791 = vmatpush1.bf16.msra.mxu0 0
    %792 = vmatprep.subr.bf16.mxu0 0
    %793 = vmatpush1.bf16.msra.mxu0 0
    %794 = vmatprep.subr.bf16.mxu0 0
    %795 = vmatpush1.bf16.msra.mxu0 0
    %796 = vmatprep.subr.bf16.mxu0 0
    %797 = vmatpush1.bf16.msra.mxu0 0
    %798 = vmatprep.subr.bf16.mxu0 0
    %799 = vmatpush1.bf16.msra.mxu0 0
    %800 = vmatprep.subr.bf16.mxu0 0
    %801 = vmatpush1.bf16.msra.mxu0 0
    %802 = vmatprep.subr.bf16.mxu0 0
    %803 = vmatpush1.bf16.msra.mxu0 %v786
    %804 = vmatprep.subr.bf16.mxu0 0
    %805 = vmatpush2.bf16.msra.mxu0 0
    %806 = vmatprep.subr.bf16.mxu0 0
    %807 = vmatpush2.bf16.msra.mxu0 0
    %808 = vmatprep.subr.bf16.mxu0 0
    %809 = vmatpush2.bf16.msra.mxu0 0
    %810 = vmatprep.subr.bf16.mxu0 0
    %811 = vmatpush2.bf16.msra.mxu0 0
    %812 = vmatprep.subr.bf16.mxu0 0
    %813 = vmatpush2.bf16.msra.mxu0 0
    %814 = vmatprep.subr.bf16.mxu0 0
    %815 = vmatpush2.bf16.msra.mxu0 0
    %816 = vmatprep.subr.bf16.mxu0 0
    %817 = vmatpush2.bf16.msra.mxu0 0
    %818 = vmatprep.subr.bf16.mxu0 0
    %819 = vmatpush2.bf16.msra.mxu0 0
    %820 = vmatprep.mubr.bf16.mxu0 0
    %821 = vmatmul.mubr.bf16.gmra.mxu0 %v783
    %v822 = vpop.f32.mrf.mxu0
    %v823 = vadd.f32 0.0, %v822
    %v824 = vpop.f32.mrf.mxu0
    %v825 = vpop.f32.mrf.mxu0
    %v826 = vpop.f32.mrf.mxu0
    %827 = vdwg.mxu0
    %828 = vrot.lane.b32.xlu0 %v147, 64
    %v829 = vpop.permute.xlu0 %828
    %v831 = vsel %vm156, %v631, 0
    %v834 = vsel %vm640, %v829, 0
    %836 = vmatprep.subr.bf16.mxu0 0
    %837 = vmatpush1.bf16.msra.mxu0 0
    %838 = vmatprep.subr.bf16.mxu0 0
    %839 = vmatpush1.bf16.msra.mxu0 0
    %840 = vmatprep.subr.bf16.mxu0 0
    %841 = vmatpush1.bf16.msra.mxu0 0
    %842 = vmatprep.subr.bf16.mxu0 0
    %843 = vmatpush1.bf16.msra.mxu0 0
    %844 = vmatprep.subr.bf16.mxu0 0
    %845 = vmatpush1.bf16.msra.mxu0 0
    %846 = vmatprep.subr.bf16.mxu0 0
    %847 = vmatpush1.bf16.msra.mxu0 0
    %848 = vmatprep.subr.bf16.mxu0 0
    %849 = vmatpush1.bf16.msra.mxu0 0
    %850 = vmatprep.subr.bf16.mxu0 0
    %851 = vmatpush1.bf16.msra.mxu0 %v834
    %852 = vmatprep.subr.bf16.mxu0 0
    %853 = vmatpush2.bf16.msra.mxu0 0
    %854 = vmatprep.subr.bf16.mxu0 0
    %855 = vmatpush2.bf16.msra.mxu0 0
    %856 = vmatprep.subr.bf16.mxu0 0
    %857 = vmatpush2.bf16.msra.mxu0 0
    %858 = vmatprep.subr.bf16.mxu0 0
    %859 = vmatpush2.bf16.msra.mxu0 0
    %860 = vmatprep.subr.bf16.mxu0 0
    %861 = vmatpush2.bf16.msra.mxu0 0
    %862 = vmatprep.subr.bf16.mxu0 0
    %863 = vmatpush2.bf16.msra.mxu0 0
    %864 = vmatprep.subr.bf16.mxu0 0
    %865 = vmatpush2.bf16.msra.mxu0 0
    %866 = vmatprep.subr.bf16.mxu0 0
    %867 = vmatpush2.bf16.msra.mxu0 0
    %868 = vmatprep.mubr.bf16.mxu0 0
    %869 = vmatmul.mubr.bf16.gmra.mxu0 %v831
    %v870 = vpop.f32.mrf.mxu0
    %v871 = vadd.f32 0.0, %v870
    %v872 = vpop.f32.mrf.mxu0
    %v873 = vpop.f32.mrf.mxu0
    %v874 = vpop.f32.mrf.mxu0
    %875 = vdwg.mxu0
    %876 = vrot.lane.b32.xlu0 %v149, 64
    %v877 = vpop.permute.xlu0 %876
    %v879 = vsel %vm156, %v632, 0
    %v882 = vsel %vm640, %v877, 0
    %884 = vmatprep.subr.bf16.mxu0 0
    %885 = vmatpush1.bf16.msra.mxu0 0
    %886 = vmatprep.subr.bf16.mxu0 0
    %887 = vmatpush1.bf16.msra.mxu0 0
    %888 = vmatprep.subr.bf16.mxu0 0
    %889 = vmatpush1.bf16.msra.mxu0 0
    %890 = vmatprep.subr.bf16.mxu0 0
    %891 = vmatpush1.bf16.msra.mxu0 0
    %892 = vmatprep.subr.bf16.mxu0 0
    %893 = vmatpush1.bf16.msra.mxu0 0
    %894 = vmatprep.subr.bf16.mxu0 0
    %895 = vmatpush1.bf16.msra.mxu0 0
    %896 = vmatprep.subr.bf16.mxu0 0
    %897 = vmatpush1.bf16.msra.mxu0 0
    %898 = vmatprep.subr.bf16.mxu0 0
    %899 = vmatpush1.bf16.msra.mxu0 %v882
    %900 = vmatprep.subr.bf16.mxu0 0
    %901 = vmatpush2.bf16.msra.mxu0 0
    %902 = vmatprep.subr.bf16.mxu0 0
    %903 = vmatpush2.bf16.msra.mxu0 0
    %904 = vmatprep.subr.bf16.mxu0 0
    %905 = vmatpush2.bf16.msra.mxu0 0
    %906 = vmatprep.subr.bf16.mxu0 0
    %907 = vmatpush2.bf16.msra.mxu0 0
    %908 = vmatprep.subr.bf16.mxu0 0
    %909 = vmatpush2.bf16.msra.mxu0 0
    %910 = vmatprep.subr.bf16.mxu0 0
    %911 = vmatpush2.bf16.msra.mxu0 0
    %912 = vmatprep.subr.bf16.mxu0 0
    %913 = vmatpush2.bf16.msra.mxu0 0
    %914 = vmatprep.subr.bf16.mxu0 0
    %915 = vmatpush2.bf16.msra.mxu0 0
    %916 = vmatprep.mubr.bf16.mxu0 0
    %917 = vmatmul.mubr.bf16.gmra.mxu0 %v879
    %v918 = vpop.f32.mrf.mxu0
    %v919 = vadd.f32 0.0, %v918
    %v920 = vpop.f32.mrf.mxu0
    %v921 = vpop.f32.mrf.mxu0
    %v922 = vpop.f32.mrf.mxu0
    %923 = vdwg.mxu0
    %924 = vrot.lane.b32.xlu0 %v151, 64
    %v925 = vpop.permute.xlu0 %924
    %v927 = vsel %vm156, %v633, 0
    %v930 = vsel %vm640, %v925, 0
    %932 = vmatprep.subr.bf16.mxu0 0
    %933 = vmatpush1.bf16.msra.mxu0 0
    %934 = vmatprep.subr.bf16.mxu0 0
    %935 = vmatpush1.bf16.msra.mxu0 0
    %936 = vmatprep.subr.bf16.mxu0 0
    %937 = vmatpush1.bf16.msra.mxu0 0
    %938 = vmatprep.subr.bf16.mxu0 0
    %939 = vmatpush1.bf16.msra.mxu0 0
    %940 = vmatprep.subr.bf16.mxu0 0
    %941 = vmatpush1.bf16.msra.mxu0 0
    %942 = vmatprep.subr.bf16.mxu0 0
    %943 = vmatpush1.bf16.msra.mxu0 0
    %944 = vmatprep.subr.bf16.mxu0 0
    %945 = vmatpush1.bf16.msra.mxu0 0
    %946 = vmatprep.subr.bf16.mxu0 0
    %947 = vmatpush1.bf16.msra.mxu0 %v930
    %948 = vmatprep.subr.bf16.mxu0 0
    %949 = vmatpush2.bf16.msra.mxu0 0
    %950 = vmatprep.subr.bf16.mxu0 0
    %951 = vmatpush2.bf16.msra.mxu0 0
    %952 = vmatprep.subr.bf16.mxu0 0
    %953 = vmatpush2.bf16.msra.mxu0 0
    %954 = vmatprep.subr.bf16.mxu0 0
    %955 = vmatpush2.bf16.msra.mxu0 0
    %956 = vmatprep.subr.bf16.mxu0 0
    %957 = vmatpush2.bf16.msra.mxu0 0
    %958 = vmatprep.subr.bf16.mxu0 0
    %959 = vmatpush2.bf16.msra.mxu0 0
    %960 = vmatprep.subr.bf16.mxu0 0
    %961 = vmatpush2.bf16.msra.mxu0 0
    %962 = vmatprep.subr.bf16.mxu0 0
    %963 = vmatpush2.bf16.msra.mxu0 0
    %964 = vmatprep.mubr.bf16.mxu0 0
    %965 = vmatmul.mubr.bf16.gmra.mxu0 %v927
    %v966 = vpop.f32.mrf.mxu0
    %v967 = vadd.f32 0.0, %v966
    %v968 = vpop.f32.mrf.mxu0
    %v969 = vpop.f32.mrf.mxu0
    %v970 = vpop.f32.mrf.mxu0
    %971 = vdwg.mxu0
    %972 = vrot.lane.b32.xlu0 %v153, 64
    %v973 = vpop.permute.xlu0 %972
    %v975 = vsel %vm156, %v634, 0
    %v978 = vsel %vm640, %v973, 0
    %980 = vmatprep.subr.bf16.mxu0 0
    %981 = vmatpush1.bf16.msra.mxu0 0
    %982 = vmatprep.subr.bf16.mxu0 0
    %983 = vmatpush1.bf16.msra.mxu0 0
    %984 = vmatprep.subr.bf16.mxu0 0
    %985 = vmatpush1.bf16.msra.mxu0 0
    %986 = vmatprep.subr.bf16.mxu0 0
    %987 = vmatpush1.bf16.msra.mxu0 0
    %988 = vmatprep.subr.bf16.mxu0 0
    %989 = vmatpush1.bf16.msra.mxu0 0
    %990 = vmatprep.subr.bf16.mxu0 0
    %991 = vmatpush1.bf16.msra.mxu0 0
    %992 = vmatprep.subr.bf16.mxu0 0
    %993 = vmatpush1.bf16.msra.mxu0 0
    %994 = vmatprep.subr.bf16.mxu0 0
    %995 = vmatpush1.bf16.msra.mxu0 %v978
    %996 = vmatprep.subr.bf16.mxu0 0
    %997 = vmatpush2.bf16.msra.mxu0 0
    %998 = vmatprep.subr.bf16.mxu0 0
    %999 = vmatpush2.bf16.msra.mxu0 0
    %1000 = vmatprep.subr.bf16.mxu0 0
    %1001 = vmatpush2.bf16.msra.mxu0 0
    %1002 = vmatprep.subr.bf16.mxu0 0
    %1003 = vmatpush2.bf16.msra.mxu0 0
    %1004 = vmatprep.subr.bf16.mxu0 0
    %1005 = vmatpush2.bf16.msra.mxu0 0
    %1006 = vmatprep.subr.bf16.mxu0 0
    %1007 = vmatpush2.bf16.msra.mxu0 0
    %1008 = vmatprep.subr.bf16.mxu0 0
    %1009 = vmatpush2.bf16.msra.mxu0 0
    %1010 = vmatprep.subr.bf16.mxu0 0
    %1011 = vmatpush2.bf16.msra.mxu0 0
    %1012 = vmatprep.mubr.bf16.mxu0 0
    %1013 = vmatmul.mubr.bf16.gmra.mxu0 %v975
    %v1014 = vpop.f32.mrf.mxu0
    %v1015 = vadd.f32 0.0, %v1014
    %v1016 = vpop.f32.mrf.mxu0
    %v1017 = vpop.f32.mrf.mxu0
    %v1018 = vpop.f32.mrf.mxu0
    %1019 = vdwg.mxu0
    %1022 = vrot.lane.b32.xlu0 %v775, 8
    %v1023 = vpop.permute.xlu0 %1022
    %1024 = vrot.lane.b32.xlu0 %v823, 8
    %v1025 = vpop.permute.xlu0 %1024
    %1030 = vrot.lane.b32.xlu0 %v871, 16
    %v1031 = vpop.permute.xlu0 %1030
    %1032 = vrot.lane.b32.xlu0 %v919, 16
    %v1033 = vpop.permute.xlu0 %1032
    %1038 = vrot.lane.b32.xlu0 %v967, 24
    %v1039 = vpop.permute.xlu0 %1038
    %1040 = vrot.lane.b32.xlu0 %v1015, 24
    %v1041 = vpop.permute.xlu0 %1040
    %v1044 = vsel %vm156, %v679, %v1023
    %v1045 = vsel %vm156, %v727, %v1025
    %vm1046 = vcmask 130048
    %v1047 = vsel %vm1046, %v1044, %v1031
    %v1048 = vsel %vm1046, %v1045, %v1033
    %vm1049 = vcmask 195584
    %v1050 = vsel %vm1049, %v1047, %v1039
    %v1051 = vsel %vm1049, %v1048, %v1041
    %v1052 = vpack.c.bf16 %v1051, %v1050
    %1053 = vrot.lane.b32.xlu0 %v89, 32
    %v1054 = vpop.permute.xlu0 %1053
    %1055 = vrot.lane.b32.xlu0 %v90, 32
    %v1056 = vpop.permute.xlu0 %1055
    %1059 = vrot.lane.b32.xlu0 %v79, 32
    %v1060 = vpop.permute.xlu0 %1059
    %v1063 = vsel %vm93, %v1052, 0
    %1065 = vmatprep.subr.bf16.mxu0 0
    %1066 = vmatpush1.bf16.msra.mxu0 0
    %1067 = vmatprep.subr.bf16.mxu0 0
    %1068 = vmatpush1.bf16.msra.mxu0 0
    %1069 = vmatprep.subr.bf16.mxu0 0
    %1070 = vmatpush1.bf16.msra.mxu0 0
    %1071 = vmatprep.subr.bf16.mxu0 0
    %1072 = vmatpush1.bf16.msra.mxu0 0
    %1073 = vmatprep.subr.bf16.mxu0 0
    %1074 = vmatpush1.bf16.msra.mxu0 0
    %1075 = vmatprep.subr.bf16.mxu0 0
    %1076 = vmatpush1.bf16.msra.mxu0 0
    %1077 = vmatprep.subr.bf16.mxu0 0
    %1078 = vmatpush1.bf16.msra.mxu0 %v1056
    %1079 = vmatprep.subr.bf16.mxu0 0
    %1080 = vmatpush1.bf16.msra.mxu0 %v1054
    %1081 = vmatprep.subr.bf16.mxu0 0
    %1082 = vmatpush2.bf16.msra.mxu0 0
    %1083 = vmatprep.subr.bf16.mxu0 0
    %1084 = vmatpush2.bf16.msra.mxu0 0
    %1085 = vmatprep.subr.bf16.mxu0 0
    %1086 = vmatpush2.bf16.msra.mxu0 0
    %1087 = vmatprep.subr.bf16.mxu0 0
    %1088 = vmatpush2.bf16.msra.mxu0 0
    %1089 = vmatprep.subr.bf16.mxu0 0
    %1090 = vmatpush2.bf16.msra.mxu0 0
    %1091 = vmatprep.subr.bf16.mxu0 0
    %1092 = vmatpush2.bf16.msra.mxu0 0
    %1093 = vmatprep.subr.bf16.mxu0 0
    %1094 = vmatpush2.bf16.msra.mxu0 0
    %1095 = vmatprep.subr.bf16.mxu0 0
    %1096 = vmatpush2.bf16.msra.mxu0 0
    %1097 = vmatprep.mubr.bf16.mxu0 0
    %1098 = vmatmul.mubr.bf16.gmra.mxu0 %v1063
    %v1099 = vpop.f32.mrf.mxu0
    %v1100 = vadd.f32 %v1060, %v1099
    %v1101 = vpop.f32.mrf.mxu0
    %v1102 = vpop.f32.mrf.mxu0
    %v1103 = vadd.f32 %v1060, %v1102
    %v1104 = vpop.f32.mrf.mxu0
    %1105 = vdwg.mxu0
    %v1106 = vadd.f32 %v1100, %v64
    %v1107 = vadd.f32 %v1103, %v65
    %v1108 = vsel %vm93, %v1106, 0.0
    %1109 = vadd.xlane.f32.xlu0 %v1108
    %v1110 = vpop.xlane.xlu0 %1109
    %v1111 = vsel %vm93, %v1107, 0.0
    %1112 = vadd.xlane.f32.xlu0 %v1111
    %v1113 = vpop.xlane.xlu0 %1112
    %v1114 = vrcp.pop 32.0
    %v1115 = vmul.f32 %v1110, %v1114
    %v1116 = vmul.f32 %v1113, %v1114
    %v1117 = vsub.f32 %v1106, %v1115
    %v1118 = vsub.f32 %v1107, %v1116
    %v1119 = vmul.f32 %v1117, %v1117
    %v1120 = vmul.f32 %v1118, %v1118
    %v1121 = vsel %vm93, %v1119, 0.0
    %1122 = vadd.xlane.f32.xlu0 %v1121
    %v1123 = vpop.xlane.xlu0 %1122
    %v1124 = vsel %vm93, %v1120, 0.0
    %1125 = vadd.xlane.f32.xlu0 %v1124
    %v1126 = vpop.xlane.xlu0 %1125
    %v1127 = vmul.f32 %v1123, %v1114
    %v1128 = vmul.f32 %v1126, %v1114
    %v1129 = vadd.f32 %v1127, 1e-05
    %v1130 = vadd.f32 %v1128, 1e-05
    %v1131 = vrsqrt.pop %v1129
    %v1132 = vrsqrt.pop %v1130
    %v1133 = vmul.f32 %v1117, %v1131
    %v1134 = vmul.f32 %v1118, %v1132
    %v1135 = vld [vmem:[%s5 + $0x2] sm:$0x1]
    %v1137 = vlaneseq
    %v1138 = vshrl.u32 %v1137, 7
    %v1139 = vsub.s32 0, %v1138
    %v1140 = vrot.slane %v1135, %v1139
    %1141 = vrot.lane.b32.xlu0 %v1140, 32
    %v1142 = vpop.permute.xlu0 %1141
    %v1144 = vmul.f32 %v1133, %v1142
    %v1145 = vmul.f32 %v1134, %v1142
    %v1146 = vld [vmem:[%s5 + $0x3] sm:$0x1]
    %v1148 = vlaneseq
    %v1149 = vshrl.u32 %v1148, 7
    %v1150 = vsub.s32 0, %v1149
    %v1151 = vrot.slane %v1146, %v1150
    %v1153 = vadd.f32 %v1144, %v1151
    %v1154 = vadd.f32 %v1145, %v1151
    %v1155 = vpack.c.bf16 %v1154, %v1153
    %v1156 = vld [vmem:[%s3 + $0x4] sm:$0xf]
    %v1157 = vld [vmem:[%s3 + $0x10] sm:$0xf]
    %v1158 = vld [vmem:[%s3 + $0x1c] sm:$0xf]
    %v1159 = vld [vmem:[%s3 + $0x28] sm:$0xf]
    %v1160 = vld [vmem:[%s5 + $0x1] sm:$0x1]
    %v1162 = vlaneseq
    %v1163 = vshrl.u32 %v1162, 7
    %v1164 = vsub.s32 0, %v1163
    %v1165 = vrot.slane %v1160, %v1164
    %v1171 = vunpack.c.l.b16 %v1156
    %v1172 = vunpack.c.l.b16 %v1157
    %v1173 = vunpack.c.l.b16 %v1158
    %v1174 = vunpack.c.l.b16 %v1159
    %v1175 = vpack.c.b16 %v1172, %v1171
    %v1176 = vpack.c.b16 %v1174, %v1173
    %v1180 = vsel %vm93, %v1155, 0
    %1182 = vmatprep.subr.bf16.mxu0 0
    %1183 = vmatpush1.bf16.msra.mxu0 0
    %1184 = vmatprep.subr.bf16.mxu0 0
    %1185 = vmatpush1.bf16.msra.mxu0 0
    %1186 = vmatprep.subr.bf16.mxu0 0
    %1187 = vmatpush1.bf16.msra.mxu0 0
    %1188 = vmatprep.subr.bf16.mxu0 0
    %1189 = vmatpush1.bf16.msra.mxu0 0
    %1190 = vmatprep.subr.bf16.mxu0 0
    %1191 = vmatpush1.bf16.msra.mxu0 0
    %1192 = vmatprep.subr.bf16.mxu0 0
    %1193 = vmatpush1.bf16.msra.mxu0 0
    %1194 = vmatprep.subr.bf16.mxu0 0
    %1195 = vmatpush1.bf16.msra.mxu0 %v1176
    %1196 = vmatprep.subr.bf16.mxu0 0
    %1197 = vmatpush1.bf16.msra.mxu0 %v1175
    %1198 = vmatprep.subr.bf16.mxu0 0
    %1199 = vmatpush2.bf16.msra.mxu0 0
    %1200 = vmatprep.subr.bf16.mxu0 0
    %1201 = vmatpush2.bf16.msra.mxu0 0
    %1202 = vmatprep.subr.bf16.mxu0 0
    %1203 = vmatpush2.bf16.msra.mxu0 0
    %1204 = vmatprep.subr.bf16.mxu0 0
    %1205 = vmatpush2.bf16.msra.mxu0 0
    %1206 = vmatprep.subr.bf16.mxu0 0
    %1207 = vmatpush2.bf16.msra.mxu0 0
    %1208 = vmatprep.subr.bf16.mxu0 0
    %1209 = vmatpush2.bf16.msra.mxu0 0
    %1210 = vmatprep.subr.bf16.mxu0 0
    %1211 = vmatpush2.bf16.msra.mxu0 0
    %1212 = vmatprep.subr.bf16.mxu0 0
    %1213 = vmatpush2.bf16.msra.mxu0 0
    %1214 = vmatprep.mubr.bf16.mxu0 0
    %1215 = vmatmul.mubr.bf16.gmra.mxu0 %v1180
    %v1216 = vpop.f32.mrf.mxu0
    %v1217 = vadd.f32 %v1165, %v1216
    %v1218 = vpop.f32.mrf.mxu0
    %v1219 = vpop.f32.mrf.mxu0
    %v1220 = vadd.f32 %v1165, %v1219
    %v1221 = vpop.f32.mrf.mxu0
    %1222 = vdwg.mxu0
    %v1223 = vpack.c.bf16 %v67, %v66
    %1224 = vrot.lane.b32.xlu0 %v1175, 96
    %v1225 = vpop.permute.xlu0 %1224
    %1226 = vrot.lane.b32.xlu0 %v1176, 96
    %v1227 = vpop.permute.xlu0 %1226
    %1230 = vrot.lane.b32.xlu0 %v1165, 96
    %v1231 = vpop.permute.xlu0 %1230
    %v1234 = vsel %vm93, %v1223, 0
    %1236 = vmatprep.subr.bf16.mxu0 0
    %1237 = vmatpush1.bf16.msra.mxu0 0
    %1238 = vmatprep.subr.bf16.mxu0 0
    %1239 = vmatpush1.bf16.msra.mxu0 0
    %1240 = vmatprep.subr.bf16.mxu0 0
    %1241 = vmatpush1.bf16.msra.mxu0 0
    %1242 = vmatprep.subr.bf16.mxu0 0
    %1243 = vmatpush1.bf16.msra.mxu0 0
    %1244 = vmatprep.subr.bf16.mxu0 0
    %1245 = vmatpush1.bf16.msra.mxu0 0
    %1246 = vmatprep.subr.bf16.mxu0 0
    %1247 = vmatpush1.bf16.msra.mxu0 0
    %1248 = vmatprep.subr.bf16.mxu0 0
    %1249 = vmatpush1.bf16.msra.mxu0 %v1227
    %1250 = vmatprep.subr.bf16.mxu0 0
    %1251 = vmatpush1.bf16.msra.mxu0 %v1225
    %1252 = vmatprep.subr.bf16.mxu0 0
    %1253 = vmatpush2.bf16.msra.mxu0 0
    %1254 = vmatprep.subr.bf16.mxu0 0
    %1255 = vmatpush2.bf16.msra.mxu0 0
    %1256 = vmatprep.subr.bf16.mxu0 0
    %1257 = vmatpush2.bf16.msra.mxu0 0
    %1258 = vmatprep.subr.bf16.mxu0 0
    %1259 = vmatpush2.bf16.msra.mxu0 0
    %1260 = vmatprep.subr.bf16.mxu0 0
    %1261 = vmatpush2.bf16.msra.mxu0 0
    %1262 = vmatprep.subr.bf16.mxu0 0
    %1263 = vmatpush2.bf16.msra.mxu0 0
    %1264 = vmatprep.subr.bf16.mxu0 0
    %1265 = vmatpush2.bf16.msra.mxu0 0
    %1266 = vmatprep.subr.bf16.mxu0 0
    %1267 = vmatpush2.bf16.msra.mxu0 0
    %1268 = vmatprep.mubr.bf16.mxu0 0
    %1269 = vmatmul.mubr.bf16.gmra.mxu0 %v1234
    %v1270 = vpop.f32.mrf.mxu0
    %v1271 = vadd.f32 %v1231, %v1270
    %v1272 = vpop.f32.mrf.mxu0
    %v1273 = vpop.f32.mrf.mxu0
    %v1274 = vadd.f32 %v1231, %v1273
    %v1275 = vpop.f32.mrf.mxu0
    %1276 = vdwg.mxu0
    %v1277 = vpack.c.bf16 %v1217, %v1217
    %v1278 = vpack.c.bf16 %v1220, %v1220
    %1281 = vrot.lane.b32.xlu0 %v1277, 120
    %v1282 = vpop.permute.xlu0 %1281
    %1283 = vrot.lane.b32.xlu0 %v1278, 120
    %v1284 = vpop.permute.xlu0 %1283
    %1285 = vrot.lane.b32.xlu0 %v1277, 112
    %v1286 = vpop.permute.xlu0 %1285
    %1287 = vrot.lane.b32.xlu0 %v1278, 112
    %v1288 = vpop.permute.xlu0 %1287
    %1289 = vrot.lane.b32.xlu0 %v1277, 104
    %v1290 = vpop.permute.xlu0 %1289
    %1291 = vrot.lane.b32.xlu0 %v1278, 104
    %v1292 = vpop.permute.xlu0 %1291
    %v1293 = vpack.c.bf16 %v1271, %v1271
    %v1294 = vpack.c.bf16 %v1274, %v1274
    %1297 = vrot.lane.b32.xlu0 %v1293, 120
    %v1298 = vpop.permute.xlu0 %1297
    %1299 = vrot.lane.b32.xlu0 %v1294, 120
    %v1300 = vpop.permute.xlu0 %1299
    %1301 = vrot.lane.b32.xlu0 %v1293, 112
    %v1302 = vpop.permute.xlu0 %1301
    %1303 = vrot.lane.b32.xlu0 %v1294, 112
    %v1304 = vpop.permute.xlu0 %1303
    %1305 = vrot.lane.b32.xlu0 %v1293, 104
    %v1306 = vpop.permute.xlu0 %1305
    %1307 = vrot.lane.b32.xlu0 %v1294, 104
    %v1308 = vpop.permute.xlu0 %1307
    %v1310 = vsel %vm156, %v1277, 0
    %v1313 = vsel %vm156, %v1293, 0
    %1315 = vmatprep.subr.bf16.mxu0 0
    %1316 = vmatpush1.bf16.xpose.msra.mxu0 0
    %1317 = vmatprep.subr.bf16.mxu0 0
    %1318 = vmatpush1.bf16.xpose.msra.mxu0 0
    %1319 = vmatprep.subr.bf16.mxu0 0
    %1320 = vmatpush1.bf16.xpose.msra.mxu0 0
    %1321 = vmatprep.subr.bf16.mxu0 0
    %1322 = vmatpush1.bf16.xpose.msra.mxu0 0
    %1323 = vmatprep.subr.bf16.mxu0 0
    %1324 = vmatpush1.bf16.xpose.msra.mxu0 0
    %1325 = vmatprep.subr.bf16.mxu0 0
    %1326 = vmatpush1.bf16.xpose.msra.mxu0 0
    %1327 = vmatprep.subr.bf16.mxu0 0
    %1328 = vmatpush1.bf16.xpose.msra.mxu0 0
    %1329 = vmatprep.subr.bf16.mxu0 0
    %1330 = vmatpush1.bf16.xpose.msra.mxu0 %v1313
    %1331 = vmatprep.subr.bf16.mxu0 0
    %1332 = vmatpush2.bf16.xpose.msra.mxu0 0
    %1333 = vmatprep.subr.bf16.mxu0 0
    %1334 = vmatpush2.bf16.xpose.msra.mxu0 0
    %1335 = vmatprep.subr.bf16.mxu0 0
    %1336 = vmatpush2.bf16.xpose.msra.mxu0 0
    %1337 = vmatprep.subr.bf16.mxu0 0
    %1338 = vmatpush2.bf16.xpose.msra.mxu0 0
    %1339 = vmatprep.subr.bf16.mxu0 0
    %1340 = vmatpush2.bf16.xpose.msra.mxu0 0
    %1341 = vmatprep.subr.bf16.mxu0 0
    %1342 = vmatpush2.bf16.xpose.msra.mxu0 0
    %1343 = vmatprep.subr.bf16.mxu0 0
    %1344 = vmatpush2.bf16.xpose.msra.mxu0 0
    %1345 = vmatprep.subr.bf16.mxu0 0
    %1346 = vmatpush2.bf16.xpose.msra.mxu0 0
    %1347 = vmatprep.mubr.bf16.mxu0 0
    %1348 = vmatmul.mubr.bf16.gmra.mxu0 %v1310
    %v1349 = vpop.f32.mrf.mxu0
    %v1350 = vadd.f32 0.0, %v1349
    %v1351 = vpop.f32.mrf.mxu0
    %v1352 = vpop.f32.mrf.mxu0
    %v1353 = vpop.f32.mrf.mxu0
    %1354 = vdwg.mxu0
    %v1356 = vsel %vm156, %v1278, 0
    %v1359 = vsel %vm156, %v1294, 0
    %1361 = vmatprep.subr.bf16.mxu0 0
    %1362 = vmatpush1.bf16.xpose.msra.mxu0 0
    %1363 = vmatprep.subr.bf16.mxu0 0
    %1364 = vmatpush1.bf16.xpose.msra.mxu0 0
    %1365 = vmatprep.subr.bf16.mxu0 0
    %1366 = vmatpush1.bf16.xpose.msra.mxu0 0
    %1367 = vmatprep.subr.bf16.mxu0 0
    %1368 = vmatpush1.bf16.xpose.msra.mxu0 0
    %1369 = vmatprep.subr.bf16.mxu0 0
    %1370 = vmatpush1.bf16.xpose.msra.mxu0 0
    %1371 = vmatprep.subr.bf16.mxu0 0
    %1372 = vmatpush1.bf16.xpose.msra.mxu0 0
    %1373 = vmatprep.subr.bf16.mxu0 0
    %1374 = vmatpush1.bf16.xpose.msra.mxu0 0
    %1375 = vmatprep.subr.bf16.mxu0 0
    %1376 = vmatpush1.bf16.xpose.msra.mxu0 %v1359
    %1377 = vmatprep.subr.bf16.mxu0 0
    %1378 = vmatpush2.bf16.xpose.msra.mxu0 0
    %1379 = vmatprep.subr.bf16.mxu0 0
    %1380 = vmatpush2.bf16.xpose.msra.mxu0 0
    %1381 = vmatprep.subr.bf16.mxu0 0
    %1382 = vmatpush2.bf16.xpose.msra.mxu0 0
    %1383 = vmatprep.subr.bf16.mxu0 0
    %1384 = vmatpush2.bf16.xpose.msra.mxu0 0
    %1385 = vmatprep.subr.bf16.mxu0 0
    %1386 = vmatpush2.bf16.xpose.msra.mxu0 0
    %1387 = vmatprep.subr.bf16.mxu0 0
    %1388 = vmatpush2.bf16.xpose.msra.mxu0 0
    %1389 = vmatprep.subr.bf16.mxu0 0
    %1390 = vmatpush2.bf16.xpose.msra.mxu0 0
    %1391 = vmatprep.subr.bf16.mxu0 0
    %1392 = vmatpush2.bf16.xpose.msra.mxu0 0
    %1393 = vmatprep.mubr.bf16.mxu0 0
    %1394 = vmatmul.mubr.bf16.gmra.mxu0 %v1356
    %v1395 = vpop.f32.mrf.mxu0
    %v1396 = vadd.f32 0.0, %v1395
    %v1397 = vpop.f32.mrf.mxu0
    %v1398 = vpop.f32.mrf.mxu0
    %v1399 = vpop.f32.mrf.mxu0
    %1400 = vdwg.mxu0
    %v1402 = vsel %vm156, %v1282, 0
    %v1405 = vsel %vm156, %v1298, 0
    %1407 = vmatprep.subr.bf16.mxu0 0
    %1408 = vmatpush1.bf16.xpose.msra.mxu0 0
    %1409 = vmatprep.subr.bf16.mxu0 0
    %1410 = vmatpush1.bf16.xpose.msra.mxu0 0
    %1411 = vmatprep.subr.bf16.mxu0 0
    %1412 = vmatpush1.bf16.xpose.msra.mxu0 0
    %1413 = vmatprep.subr.bf16.mxu0 0
    %1414 = vmatpush1.bf16.xpose.msra.mxu0 0
    %1415 = vmatprep.subr.bf16.mxu0 0
    %1416 = vmatpush1.bf16.xpose.msra.mxu0 0
    %1417 = vmatprep.subr.bf16.mxu0 0
    %1418 = vmatpush1.bf16.xpose.msra.mxu0 0
    %1419 = vmatprep.subr.bf16.mxu0 0
    %1420 = vmatpush1.bf16.xpose.msra.mxu0 0
    %1421 = vmatprep.subr.bf16.mxu0 0
    %1422 = vmatpush1.bf16.xpose.msra.mxu0 %v1405
    %1423 = vmatprep.subr.bf16.mxu0 0
    %1424 = vmatpush2.bf16.xpose.msra.mxu0 0
    %1425 = vmatprep.subr.bf16.mxu0 0
    %1426 = vmatpush2.bf16.xpose.msra.mxu0 0
    %1427 = vmatprep.subr.bf16.mxu0 0
    %1428 = vmatpush2.bf16.xpose.msra.mxu0 0
    %1429 = vmatprep.subr.bf16.mxu0 0
    %1430 = vmatpush2.bf16.xpose.msra.mxu0 0
    %1431 = vmatprep.subr.bf16.mxu0 0
    %1432 = vmatpush2.bf16.xpose.msra.mxu0 0
    %1433 = vmatprep.subr.bf16.mxu0 0
    %1434 = vmatpush2.bf16.xpose.msra.mxu0 0
    %1435 = vmatprep.subr.bf16.mxu0 0
    %1436 = vmatpush2.bf16.xpose.msra.mxu0 0
    %1437 = vmatprep.subr.bf16.mxu0 0
    %1438 = vmatpush2.bf16.xpose.msra.mxu0 0
    %1439 = vmatprep.mubr.bf16.mxu0 0
    %1440 = vmatmul.mubr.bf16.gmra.mxu0 %v1402
    %v1441 = vpop.f32.mrf.mxu0
    %v1442 = vadd.f32 0.0, %v1441
    %v1443 = vpop.f32.mrf.mxu0
    %v1444 = vpop.f32.mrf.mxu0
    %v1445 = vpop.f32.mrf.mxu0
    %1446 = vdwg.mxu0
    %v1448 = vsel %vm156, %v1284, 0
    %v1451 = vsel %vm156, %v1300, 0
    %1453 = vmatprep.subr.bf16.mxu0 0
    %1454 = vmatpush1.bf16.xpose.msra.mxu0 0
    %1455 = vmatprep.subr.bf16.mxu0 0
    %1456 = vmatpush1.bf16.xpose.msra.mxu0 0
    %1457 = vmatprep.subr.bf16.mxu0 0
    %1458 = vmatpush1.bf16.xpose.msra.mxu0 0
    %1459 = vmatprep.subr.bf16.mxu0 0
    %1460 = vmatpush1.bf16.xpose.msra.mxu0 0
    %1461 = vmatprep.subr.bf16.mxu0 0
    %1462 = vmatpush1.bf16.xpose.msra.mxu0 0
    %1463 = vmatprep.subr.bf16.mxu0 0
    %1464 = vmatpush1.bf16.xpose.msra.mxu0 0
    %1465 = vmatprep.subr.bf16.mxu0 0
    %1466 = vmatpush1.bf16.xpose.msra.mxu0 0
    %1467 = vmatprep.subr.bf16.mxu0 0
    %1468 = vmatpush1.bf16.xpose.msra.mxu0 %v1451
    %1469 = vmatprep.subr.bf16.mxu0 0
    %1470 = vmatpush2.bf16.xpose.msra.mxu0 0
    %1471 = vmatprep.subr.bf16.mxu0 0
    %1472 = vmatpush2.bf16.xpose.msra.mxu0 0
    %1473 = vmatprep.subr.bf16.mxu0 0
    %1474 = vmatpush2.bf16.xpose.msra.mxu0 0
    %1475 = vmatprep.subr.bf16.mxu0 0
    %1476 = vmatpush2.bf16.xpose.msra.mxu0 0
    %1477 = vmatprep.subr.bf16.mxu0 0
    %1478 = vmatpush2.bf16.xpose.msra.mxu0 0
    %1479 = vmatprep.subr.bf16.mxu0 0
    %1480 = vmatpush2.bf16.xpose.msra.mxu0 0
    %1481 = vmatprep.subr.bf16.mxu0 0
    %1482 = vmatpush2.bf16.xpose.msra.mxu0 0
    %1483 = vmatprep.subr.bf16.mxu0 0
    %1484 = vmatpush2.bf16.xpose.msra.mxu0 0
    %1485 = vmatprep.mubr.bf16.mxu0 0
    %1486 = vmatmul.mubr.bf16.gmra.mxu0 %v1448
    %v1487 = vpop.f32.mrf.mxu0
    %v1488 = vadd.f32 0.0, %v1487
    %v1489 = vpop.f32.mrf.mxu0
    %v1490 = vpop.f32.mrf.mxu0
    %v1491 = vpop.f32.mrf.mxu0
    %1492 = vdwg.mxu0
    %v1494 = vsel %vm156, %v1286, 0
    %v1497 = vsel %vm156, %v1302, 0
    %1499 = vmatprep.subr.bf16.mxu0 0
    %1500 = vmatpush1.bf16.xpose.msra.mxu0 0
    %1501 = vmatprep.subr.bf16.mxu0 0
    %1502 = vmatpush1.bf16.xpose.msra.mxu0 0
    %1503 = vmatprep.subr.bf16.mxu0 0
    %1504 = vmatpush1.bf16.xpose.msra.mxu0 0
    %1505 = vmatprep.subr.bf16.mxu0 0
    %1506 = vmatpush1.bf16.xpose.msra.mxu0 0
    %1507 = vmatprep.subr.bf16.mxu0 0
    %1508 = vmatpush1.bf16.xpose.msra.mxu0 0
    %1509 = vmatprep.subr.bf16.mxu0 0
    %1510 = vmatpush1.bf16.xpose.msra.mxu0 0
    %1511 = vmatprep.subr.bf16.mxu0 0
    %1512 = vmatpush1.bf16.xpose.msra.mxu0 0
    %1513 = vmatprep.subr.bf16.mxu0 0
    %1514 = vmatpush1.bf16.xpose.msra.mxu0 %v1497
    %1515 = vmatprep.subr.bf16.mxu0 0
    %1516 = vmatpush2.bf16.xpose.msra.mxu0 0
    %1517 = vmatprep.subr.bf16.mxu0 0
    %1518 = vmatpush2.bf16.xpose.msra.mxu0 0
    %1519 = vmatprep.subr.bf16.mxu0 0
    %1520 = vmatpush2.bf16.xpose.msra.mxu0 0
    %1521 = vmatprep.subr.bf16.mxu0 0
    %1522 = vmatpush2.bf16.xpose.msra.mxu0 0
    %1523 = vmatprep.subr.bf16.mxu0 0
    %1524 = vmatpush2.bf16.xpose.msra.mxu0 0
    %1525 = vmatprep.subr.bf16.mxu0 0
    %1526 = vmatpush2.bf16.xpose.msra.mxu0 0
    %1527 = vmatprep.subr.bf16.mxu0 0
    %1528 = vmatpush2.bf16.xpose.msra.mxu0 0
    %1529 = vmatprep.subr.bf16.mxu0 0
    %1530 = vmatpush2.bf16.xpose.msra.mxu0 0
    %1531 = vmatprep.mubr.bf16.mxu0 0
    %1532 = vmatmul.mubr.bf16.gmra.mxu0 %v1494
    %v1533 = vpop.f32.mrf.mxu0
    %v1534 = vadd.f32 0.0, %v1533
    %v1535 = vpop.f32.mrf.mxu0
    %v1536 = vpop.f32.mrf.mxu0
    %v1537 = vpop.f32.mrf.mxu0
    %1538 = vdwg.mxu0
    %v1540 = vsel %vm156, %v1288, 0
    %v1543 = vsel %vm156, %v1304, 0
    %1545 = vmatprep.subr.bf16.mxu0 0
    %1546 = vmatpush1.bf16.xpose.msra.mxu0 0
    %1547 = vmatprep.subr.bf16.mxu0 0
    %1548 = vmatpush1.bf16.xpose.msra.mxu0 0
    %1549 = vmatprep.subr.bf16.mxu0 0
    %1550 = vmatpush1.bf16.xpose.msra.mxu0 0
    %1551 = vmatprep.subr.bf16.mxu0 0
    %1552 = vmatpush1.bf16.xpose.msra.mxu0 0
    %1553 = vmatprep.subr.bf16.mxu0 0
    %1554 = vmatpush1.bf16.xpose.msra.mxu0 0
    %1555 = vmatprep.subr.bf16.mxu0 0
    %1556 = vmatpush1.bf16.xpose.msra.mxu0 0
    %1557 = vmatprep.subr.bf16.mxu0 0
    %1558 = vmatpush1.bf16.xpose.msra.mxu0 0
    %1559 = vmatprep.subr.bf16.mxu0 0
    %1560 = vmatpush1.bf16.xpose.msra.mxu0 %v1543
    %1561 = vmatprep.subr.bf16.mxu0 0
    %1562 = vmatpush2.bf16.xpose.msra.mxu0 0
    %1563 = vmatprep.subr.bf16.mxu0 0
    %1564 = vmatpush2.bf16.xpose.msra.mxu0 0
    %1565 = vmatprep.subr.bf16.mxu0 0
    %1566 = vmatpush2.bf16.xpose.msra.mxu0 0
    %1567 = vmatprep.subr.bf16.mxu0 0
    %1568 = vmatpush2.bf16.xpose.msra.mxu0 0
    %1569 = vmatprep.subr.bf16.mxu0 0
    %1570 = vmatpush2.bf16.xpose.msra.mxu0 0
    %1571 = vmatprep.subr.bf16.mxu0 0
    %1572 = vmatpush2.bf16.xpose.msra.mxu0 0
    %1573 = vmatprep.subr.bf16.mxu0 0
    %1574 = vmatpush2.bf16.xpose.msra.mxu0 0
    %1575 = vmatprep.subr.bf16.mxu0 0
    %1576 = vmatpush2.bf16.xpose.msra.mxu0 0
    %1577 = vmatprep.mubr.bf16.mxu0 0
    %1578 = vmatmul.mubr.bf16.gmra.mxu0 %v1540
    %v1579 = vpop.f32.mrf.mxu0
    %v1580 = vadd.f32 0.0, %v1579
    %v1581 = vpop.f32.mrf.mxu0
    %v1582 = vpop.f32.mrf.mxu0
    %v1583 = vpop.f32.mrf.mxu0
    %1584 = vdwg.mxu0
    %v1586 = vsel %vm156, %v1290, 0
    %v1589 = vsel %vm156, %v1306, 0
    %1591 = vmatprep.subr.bf16.mxu0 0
    %1592 = vmatpush1.bf16.xpose.msra.mxu0 0
    %1593 = vmatprep.subr.bf16.mxu0 0
    %1594 = vmatpush1.bf16.xpose.msra.mxu0 0
    %1595 = vmatprep.subr.bf16.mxu0 0
    %1596 = vmatpush1.bf16.xpose.msra.mxu0 0
    %1597 = vmatprep.subr.bf16.mxu0 0
    %1598 = vmatpush1.bf16.xpose.msra.mxu0 0
    %1599 = vmatprep.subr.bf16.mxu0 0
    %1600 = vmatpush1.bf16.xpose.msra.mxu0 0
    %1601 = vmatprep.subr.bf16.mxu0 0
    %1602 = vmatpush1.bf16.xpose.msra.mxu0 0
    %1603 = vmatprep.subr.bf16.mxu0 0
    %1604 = vmatpush1.bf16.xpose.msra.mxu0 0
    %1605 = vmatprep.subr.bf16.mxu0 0
    %1606 = vmatpush1.bf16.xpose.msra.mxu0 %v1589
    %1607 = vmatprep.subr.bf16.mxu0 0
    %1608 = vmatpush2.bf16.xpose.msra.mxu0 0
    %1609 = vmatprep.subr.bf16.mxu0 0
    %1610 = vmatpush2.bf16.xpose.msra.mxu0 0
    %1611 = vmatprep.subr.bf16.mxu0 0
    %1612 = vmatpush2.bf16.xpose.msra.mxu0 0
    %1613 = vmatprep.subr.bf16.mxu0 0
    %1614 = vmatpush2.bf16.xpose.msra.mxu0 0
    %1615 = vmatprep.subr.bf16.mxu0 0
    %1616 = vmatpush2.bf16.xpose.msra.mxu0 0
    %1617 = vmatprep.subr.bf16.mxu0 0
    %1618 = vmatpush2.bf16.xpose.msra.mxu0 0
    %1619 = vmatprep.subr.bf16.mxu0 0
    %1620 = vmatpush2.bf16.xpose.msra.mxu0 0
    %1621 = vmatprep.subr.bf16.mxu0 0
    %1622 = vmatpush2.bf16.xpose.msra.mxu0 0
    %1623 = vmatprep.mubr.bf16.mxu0 0
    %1624 = vmatmul.mubr.bf16.gmra.mxu0 %v1586
    %v1625 = vpop.f32.mrf.mxu0
    %v1626 = vadd.f32 0.0, %v1625
    %v1627 = vpop.f32.mrf.mxu0
    %v1628 = vpop.f32.mrf.mxu0
    %v1629 = vpop.f32.mrf.mxu0
    %1630 = vdwg.mxu0
    %v1632 = vsel %vm156, %v1292, 0
    %v1635 = vsel %vm156, %v1308, 0
    %1637 = vmatprep.subr.bf16.mxu0 0
    %1638 = vmatpush1.bf16.xpose.msra.mxu0 0
    %1639 = vmatprep.subr.bf16.mxu0 0
    %1640 = vmatpush1.bf16.xpose.msra.mxu0 0
    %1641 = vmatprep.subr.bf16.mxu0 0
    %1642 = vmatpush1.bf16.xpose.msra.mxu0 0
    %1643 = vmatprep.subr.bf16.mxu0 0
    %1644 = vmatpush1.bf16.xpose.msra.mxu0 0
    %1645 = vmatprep.subr.bf16.mxu0 0
    %1646 = vmatpush1.bf16.xpose.msra.mxu0 0
    %1647 = vmatprep.subr.bf16.mxu0 0
    %1648 = vmatpush1.bf16.xpose.msra.mxu0 0
    %1649 = vmatprep.subr.bf16.mxu0 0
    %1650 = vmatpush1.bf16.xpose.msra.mxu0 0
    %1651 = vmatprep.subr.bf16.mxu0 0
    %1652 = vmatpush1.bf16.xpose.msra.mxu0 %v1635
    %1653 = vmatprep.subr.bf16.mxu0 0
    %1654 = vmatpush2.bf16.xpose.msra.mxu0 0
    %1655 = vmatprep.subr.bf16.mxu0 0
    %1656 = vmatpush2.bf16.xpose.msra.mxu0 0
    %1657 = vmatprep.subr.bf16.mxu0 0
    %1658 = vmatpush2.bf16.xpose.msra.mxu0 0
    %1659 = vmatprep.subr.bf16.mxu0 0
    %1660 = vmatpush2.bf16.xpose.msra.mxu0 0
    %1661 = vmatprep.subr.bf16.mxu0 0
    %1662 = vmatpush2.bf16.xpose.msra.mxu0 0
    %1663 = vmatprep.subr.bf16.mxu0 0
    %1664 = vmatpush2.bf16.xpose.msra.mxu0 0
    %1665 = vmatprep.subr.bf16.mxu0 0
    %1666 = vmatpush2.bf16.xpose.msra.mxu0 0
    %1667 = vmatprep.subr.bf16.mxu0 0
    %1668 = vmatpush2.bf16.xpose.msra.mxu0 0
    %1669 = vmatprep.mubr.bf16.mxu0 0
    %1670 = vmatmul.mubr.bf16.gmra.mxu0 %v1632
    %v1671 = vpop.f32.mrf.mxu0
    %v1672 = vadd.f32 0.0, %v1671
    %v1673 = vpop.f32.mrf.mxu0
    %v1674 = vpop.f32.mrf.mxu0
    %v1675 = vpop.f32.mrf.mxu0
    %1676 = vdwg.mxu0
    %v1677 = vsel %vm156, %v1350, -inf
    %1678 = vmax.xlane.f32.xlu0 %v1677
    %v1679 = vpop.xlane.xlu0 %1678
    %v1680 = vsel %vm156, %v1396, -inf
    %1681 = vmax.xlane.f32.xlu0 %v1680
    %v1682 = vpop.xlane.xlu0 %1681
    %v1683 = vsel %vm156, %v1442, -inf
    %1684 = vmax.xlane.f32.xlu0 %v1683
    %v1685 = vpop.xlane.xlu0 %1684
    %v1686 = vsel %vm156, %v1488, -inf
    %1687 = vmax.xlane.f32.xlu0 %v1686
    %v1688 = vpop.xlane.xlu0 %1687
    %v1689 = vsel %vm156, %v1534, -inf
    %1690 = vmax.xlane.f32.xlu0 %v1689
    %v1691 = vpop.xlane.xlu0 %1690
    %v1692 = vsel %vm156, %v1580, -inf
    %1693 = vmax.xlane.f32.xlu0 %v1692
    %v1694 = vpop.xlane.xlu0 %1693
    %v1695 = vsel %vm156, %v1626, -inf
    %1696 = vmax.xlane.f32.xlu0 %v1695
    %v1697 = vpop.xlane.xlu0 %1696
    %v1698 = vsel %vm156, %v1672, -inf
    %1699 = vmax.xlane.f32.xlu0 %v1698
    %v1700 = vpop.xlane.xlu0 %1699
    %v1701 = vsub.f32 %v1350, %v1679
    %v1702 = vsub.f32 %v1396, %v1682
    %v1703 = vsub.f32 %v1442, %v1685
    %v1704 = vsub.f32 %v1488, %v1688
    %v1705 = vsub.f32 %v1534, %v1691
    %v1706 = vsub.f32 %v1580, %v1694
    %v1707 = vsub.f32 %v1626, %v1697
    %v1708 = vsub.f32 %v1672, %v1700
    %v1709 = vmul.f32 %v1701, 1.442695
    %v1710 = vpow.pop %v1709
    %v1711 = vmul.f32 %v1702, 1.442695
    %v1712 = vpow.pop %v1711
    %v1713 = vmul.f32 %v1703, 1.442695
    %v1714 = vpow.pop %v1713
    %v1715 = vmul.f32 %v1704, 1.442695
    %v1716 = vpow.pop %v1715
    %v1717 = vmul.f32 %v1705, 1.442695
    %v1718 = vpow.pop %v1717
    %v1719 = vmul.f32 %v1706, 1.442695
    %v1720 = vpow.pop %v1719
    %v1721 = vmul.f32 %v1707, 1.442695
    %v1722 = vpow.pop %v1721
    %v1723 = vmul.f32 %v1708, 1.442695
    %v1724 = vpow.pop %v1723
    %v1725 = vsel %vm156, %v1710, 0.0
    %1726 = vadd.xlane.f32.xlu0 %v1725
    %v1727 = vpop.xlane.xlu0 %1726
    %v1728 = vsel %vm156, %v1712, 0.0
    %1729 = vadd.xlane.f32.xlu0 %v1728
    %v1730 = vpop.xlane.xlu0 %1729
    %v1731 = vsel %vm156, %v1714, 0.0
    %1732 = vadd.xlane.f32.xlu0 %v1731
    %v1733 = vpop.xlane.xlu0 %1732
    %v1734 = vsel %vm156, %v1716, 0.0
    %1735 = vadd.xlane.f32.xlu0 %v1734
    %v1736 = vpop.xlane.xlu0 %1735
    %v1737 = vsel %vm156, %v1718, 0.0
    %1738 = vadd.xlane.f32.xlu0 %v1737
    %v1739 = vpop.xlane.xlu0 %1738
    %v1740 = vsel %vm156, %v1720, 0.0
    %1741 = vadd.xlane.f32.xlu0 %v1740
    %v1742 = vpop.xlane.xlu0 %1741
    %v1743 = vsel %vm156, %v1722, 0.0
    %1744 = vadd.xlane.f32.xlu0 %v1743
    %v1745 = vpop.xlane.xlu0 %1744
    %v1746 = vsel %vm156, %v1724, 0.0
    %1747 = vadd.xlane.f32.xlu0 %v1746
    %v1748 = vpop.xlane.xlu0 %1747
    %v1749 = vrcp.pop %v1727
    %v1750 = vrcp.pop %v1730
    %v1751 = vrcp.pop %v1733
    %v1752 = vrcp.pop %v1736
    %v1753 = vrcp.pop %v1739
    %v1754 = vrcp.pop %v1742
    %v1755 = vrcp.pop %v1745
    %v1756 = vrcp.pop %v1748
    %v1757 = vmul.f32 %v1710, %v1749
    %v1758 = vmul.f32 %v1712, %v1750
    %v1759 = vmul.f32 %v1714, %v1751
    %v1760 = vmul.f32 %v1716, %v1752
    %v1761 = vmul.f32 %v1718, %v1753
    %v1762 = vmul.f32 %v1720, %v1754
    %v1763 = vmul.f32 %v1722, %v1755
    %v1764 = vmul.f32 %v1724, %v1756
    %v1765 = vpack.c.bf16 %v1757, %v1757
    %v1766 = vpack.c.bf16 %v1758, %v1758
    %v1767 = vpack.c.bf16 %v1759, %v1759
    %v1768 = vpack.c.bf16 %v1760, %v1760
    %v1769 = vpack.c.bf16 %v1761, %v1761
    %v1770 = vpack.c.bf16 %v1762, %v1762
    %v1771 = vpack.c.bf16 %v1763, %v1763
    %v1772 = vpack.c.bf16 %v1764, %v1764
    %1773 = vrot.lane.b32.xlu0 %v1293, 96
    %v1774 = vpop.permute.xlu0 %1773
    %v1776 = vsel %vm156, %v1765, 0
    %v1779 = vsel %vm640, %v1774, 0
    %1781 = vmatprep.subr.bf16.mxu0 0
    %1782 = vmatpush1.bf16.msra.mxu0 0
    %1783 = vmatprep.subr.bf16.mxu0 0
    %1784 = vmatpush1.bf16.msra.mxu0 0
    %1785 = vmatprep.subr.bf16.mxu0 0
    %1786 = vmatpush1.bf16.msra.mxu0 0
    %1787 = vmatprep.subr.bf16.mxu0 0
    %1788 = vmatpush1.bf16.msra.mxu0 0
    %1789 = vmatprep.subr.bf16.mxu0 0
    %1790 = vmatpush1.bf16.msra.mxu0 0
    %1791 = vmatprep.subr.bf16.mxu0 0
    %1792 = vmatpush1.bf16.msra.mxu0 0
    %1793 = vmatprep.subr.bf16.mxu0 0
    %1794 = vmatpush1.bf16.msra.mxu0 0
    %1795 = vmatprep.subr.bf16.mxu0 0
    %1796 = vmatpush1.bf16.msra.mxu0 %v1779
    %1797 = vmatprep.subr.bf16.mxu0 0
    %1798 = vmatpush2.bf16.msra.mxu0 0
    %1799 = vmatprep.subr.bf16.mxu0 0
    %1800 = vmatpush2.bf16.msra.mxu0 0
    %1801 = vmatprep.subr.bf16.mxu0 0
    %1802 = vmatpush2.bf16.msra.mxu0 0
    %1803 = vmatprep.subr.bf16.mxu0 0
    %1804 = vmatpush2.bf16.msra.mxu0 0
    %1805 = vmatprep.subr.bf16.mxu0 0
    %1806 = vmatpush2.bf16.msra.mxu0 0
    %1807 = vmatprep.subr.bf16.mxu0 0
    %1808 = vmatpush2.bf16.msra.mxu0 0
    %1809 = vmatprep.subr.bf16.mxu0 0
    %1810 = vmatpush2.bf16.msra.mxu0 0
    %1811 = vmatprep.subr.bf16.mxu0 0
    %1812 = vmatpush2.bf16.msra.mxu0 0
    %1813 = vmatprep.mubr.bf16.mxu0 0
    %1814 = vmatmul.mubr.bf16.gmra.mxu0 %v1776
    %v1815 = vpop.f32.mrf.mxu0
    %v1816 = vadd.f32 0.0, %v1815
    %v1817 = vpop.f32.mrf.mxu0
    %v1818 = vpop.f32.mrf.mxu0
    %v1819 = vpop.f32.mrf.mxu0
    %1820 = vdwg.mxu0
    %1821 = vrot.lane.b32.xlu0 %v1294, 96
    %v1822 = vpop.permute.xlu0 %1821
    %v1824 = vsel %vm156, %v1766, 0
    %v1827 = vsel %vm640, %v1822, 0
    %1829 = vmatprep.subr.bf16.mxu0 0
    %1830 = vmatpush1.bf16.msra.mxu0 0
    %1831 = vmatprep.subr.bf16.mxu0 0
    %1832 = vmatpush1.bf16.msra.mxu0 0
    %1833 = vmatprep.subr.bf16.mxu0 0
    %1834 = vmatpush1.bf16.msra.mxu0 0
    %1835 = vmatprep.subr.bf16.mxu0 0
    %1836 = vmatpush1.bf16.msra.mxu0 0
    %1837 = vmatprep.subr.bf16.mxu0 0
    %1838 = vmatpush1.bf16.msra.mxu0 0
    %1839 = vmatprep.subr.bf16.mxu0 0
    %1840 = vmatpush1.bf16.msra.mxu0 0
    %1841 = vmatprep.subr.bf16.mxu0 0
    %1842 = vmatpush1.bf16.msra.mxu0 0
    %1843 = vmatprep.subr.bf16.mxu0 0
    %1844 = vmatpush1.bf16.msra.mxu0 %v1827
    %1845 = vmatprep.subr.bf16.mxu0 0
    %1846 = vmatpush2.bf16.msra.mxu0 0
    %1847 = vmatprep.subr.bf16.mxu0 0
    %1848 = vmatpush2.bf16.msra.mxu0 0
    %1849 = vmatprep.subr.bf16.mxu0 0
    %1850 = vmatpush2.bf16.msra.mxu0 0
    %1851 = vmatprep.subr.bf16.mxu0 0
    %1852 = vmatpush2.bf16.msra.mxu0 0
    %1853 = vmatprep.subr.bf16.mxu0 0
    %1854 = vmatpush2.bf16.msra.mxu0 0
    %1855 = vmatprep.subr.bf16.mxu0 0
    %1856 = vmatpush2.bf16.msra.mxu0 0
    %1857 = vmatprep.subr.bf16.mxu0 0
    %1858 = vmatpush2.bf16.msra.mxu0 0
    %1859 = vmatprep.subr.bf16.mxu0 0
    %1860 = vmatpush2.bf16.msra.mxu0 0
    %1861 = vmatprep.mubr.bf16.mxu0 0
    %1862 = vmatmul.mubr.bf16.gmra.mxu0 %v1824
    %v1863 = vpop.f32.mrf.mxu0
    %v1864 = vadd.f32 0.0, %v1863
    %v1865 = vpop.f32.mrf.mxu0
    %v1866 = vpop.f32.mrf.mxu0
    %v1867 = vpop.f32.mrf.mxu0
    %1868 = vdwg.mxu0
    %1869 = vrot.lane.b32.xlu0 %v1298, 96
    %v1870 = vpop.permute.xlu0 %1869
    %v1872 = vsel %vm156, %v1767, 0
    %v1875 = vsel %vm640, %v1870, 0
    %1877 = vmatprep.subr.bf16.mxu0 0
    %1878 = vmatpush1.bf16.msra.mxu0 0
    %1879 = vmatprep.subr.bf16.mxu0 0
    %1880 = vmatpush1.bf16.msra.mxu0 0
    %1881 = vmatprep.subr.bf16.mxu0 0
    %1882 = vmatpush1.bf16.msra.mxu0 0
    %1883 = vmatprep.subr.bf16.mxu0 0
    %1884 = vmatpush1.bf16.msra.mxu0 0
    %1885 = vmatprep.subr.bf16.mxu0 0
    %1886 = vmatpush1.bf16.msra.mxu0 0
    %1887 = vmatprep.subr.bf16.mxu0 0
    %1888 = vmatpush1.bf16.msra.mxu0 0
    %1889 = vmatprep.subr.bf16.mxu0 0
    %1890 = vmatpush1.bf16.msra.mxu0 0
    %1891 = vmatprep.subr.bf16.mxu0 0
    %1892 = vmatpush1.bf16.msra.mxu0 %v1875
    %1893 = vmatprep.subr.bf16.mxu0 0
    %1894 = vmatpush2.bf16.msra.mxu0 0
    %1895 = vmatprep.subr.bf16.mxu0 0
    %1896 = vmatpush2.bf16.msra.mxu0 0
    %1897 = vmatprep.subr.bf16.mxu0 0
    %1898 = vmatpush2.bf16.msra.mxu0 0
    %1899 = vmatprep.subr.bf16.mxu0 0
    %1900 = vmatpush2.bf16.msra.mxu0 0
    %1901 = vmatprep.subr.bf16.mxu0 0
    %1902 = vmatpush2.bf16.msra.mxu0 0
    %1903 = vmatprep.subr.bf16.mxu0 0
    %1904 = vmatpush2.bf16.msra.mxu0 0
    %1905 = vmatprep.subr.bf16.mxu0 0
    %1906 = vmatpush2.bf16.msra.mxu0 0
    %1907 = vmatprep.subr.bf16.mxu0 0
    %1908 = vmatpush2.bf16.msra.mxu0 0
    %1909 = vmatprep.mubr.bf16.mxu0 0
    %1910 = vmatmul.mubr.bf16.gmra.mxu0 %v1872
    %v1911 = vpop.f32.mrf.mxu0
    %v1912 = vadd.f32 0.0, %v1911
    %v1913 = vpop.f32.mrf.mxu0
    %v1914 = vpop.f32.mrf.mxu0
    %v1915 = vpop.f32.mrf.mxu0
    %1916 = vdwg.mxu0
    %1917 = vrot.lane.b32.xlu0 %v1300, 96
    %v1918 = vpop.permute.xlu0 %1917
    %v1920 = vsel %vm156, %v1768, 0
    %v1923 = vsel %vm640, %v1918, 0
    %1925 = vmatprep.subr.bf16.mxu0 0
    %1926 = vmatpush1.bf16.msra.mxu0 0
    %1927 = vmatprep.subr.bf16.mxu0 0
    %1928 = vmatpush1.bf16.msra.mxu0 0
    %1929 = vmatprep.subr.bf16.mxu0 0
    %1930 = vmatpush1.bf16.msra.mxu0 0
    %1931 = vmatprep.subr.bf16.mxu0 0
    %1932 = vmatpush1.bf16.msra.mxu0 0
    %1933 = vmatprep.subr.bf16.mxu0 0
    %1934 = vmatpush1.bf16.msra.mxu0 0
    %1935 = vmatprep.subr.bf16.mxu0 0
    %1936 = vmatpush1.bf16.msra.mxu0 0
    %1937 = vmatprep.subr.bf16.mxu0 0
    %1938 = vmatpush1.bf16.msra.mxu0 0
    %1939 = vmatprep.subr.bf16.mxu0 0
    %1940 = vmatpush1.bf16.msra.mxu0 %v1923
    %1941 = vmatprep.subr.bf16.mxu0 0
    %1942 = vmatpush2.bf16.msra.mxu0 0
    %1943 = vmatprep.subr.bf16.mxu0 0
    %1944 = vmatpush2.bf16.msra.mxu0 0
    %1945 = vmatprep.subr.bf16.mxu0 0
    %1946 = vmatpush2.bf16.msra.mxu0 0
    %1947 = vmatprep.subr.bf16.mxu0 0
    %1948 = vmatpush2.bf16.msra.mxu0 0
    %1949 = vmatprep.subr.bf16.mxu0 0
    %1950 = vmatpush2.bf16.msra.mxu0 0
    %1951 = vmatprep.subr.bf16.mxu0 0
    %1952 = vmatpush2.bf16.msra.mxu0 0
    %1953 = vmatprep.subr.bf16.mxu0 0
    %1954 = vmatpush2.bf16.msra.mxu0 0
    %1955 = vmatprep.subr.bf16.mxu0 0
    %1956 = vmatpush2.bf16.msra.mxu0 0
    %1957 = vmatprep.mubr.bf16.mxu0 0
    %1958 = vmatmul.mubr.bf16.gmra.mxu0 %v1920
    %v1959 = vpop.f32.mrf.mxu0
    %v1960 = vadd.f32 0.0, %v1959
    %v1961 = vpop.f32.mrf.mxu0
    %v1962 = vpop.f32.mrf.mxu0
    %v1963 = vpop.f32.mrf.mxu0
    %1964 = vdwg.mxu0
    %1965 = vrot.lane.b32.xlu0 %v1302, 96
    %v1966 = vpop.permute.xlu0 %1965
    %v1968 = vsel %vm156, %v1769, 0
    %v1971 = vsel %vm640, %v1966, 0
    %1973 = vmatprep.subr.bf16.mxu0 0
    %1974 = vmatpush1.bf16.msra.mxu0 0
    %1975 = vmatprep.subr.bf16.mxu0 0
    %1976 = vmatpush1.bf16.msra.mxu0 0
    %1977 = vmatprep.subr.bf16.mxu0 0
    %1978 = vmatpush1.bf16.msra.mxu0 0
    %1979 = vmatprep.subr.bf16.mxu0 0
    %1980 = vmatpush1.bf16.msra.mxu0 0
    %1981 = vmatprep.subr.bf16.mxu0 0
    %1982 = vmatpush1.bf16.msra.mxu0 0
    %1983 = vmatprep.subr.bf16.mxu0 0
    %1984 = vmatpush1.bf16.msra.mxu0 0
    %1985 = vmatprep.subr.bf16.mxu0 0
    %1986 = vmatpush1.bf16.msra.mxu0 0
    %1987 = vmatprep.subr.bf16.mxu0 0
    %1988 = vmatpush1.bf16.msra.mxu0 %v1971
    %1989 = vmatprep.subr.bf16.mxu0 0
    %1990 = vmatpush2.bf16.msra.mxu0 0
    %1991 = vmatprep.subr.bf16.mxu0 0
    %1992 = vmatpush2.bf16.msra.mxu0 0
    %1993 = vmatprep.subr.bf16.mxu0 0
    %1994 = vmatpush2.bf16.msra.mxu0 0
    %1995 = vmatprep.subr.bf16.mxu0 0
    %1996 = vmatpush2.bf16.msra.mxu0 0
    %1997 = vmatprep.subr.bf16.mxu0 0
    %1998 = vmatpush2.bf16.msra.mxu0 0
    %1999 = vmatprep.subr.bf16.mxu0 0
    %2000 = vmatpush2.bf16.msra.mxu0 0
    %2001 = vmatprep.subr.bf16.mxu0 0
    %2002 = vmatpush2.bf16.msra.mxu0 0
    %2003 = vmatprep.subr.bf16.mxu0 0
    %2004 = vmatpush2.bf16.msra.mxu0 0
    %2005 = vmatprep.mubr.bf16.mxu0 0
    %2006 = vmatmul.mubr.bf16.gmra.mxu0 %v1968
    %v2007 = vpop.f32.mrf.mxu0
    %v2008 = vadd.f32 0.0, %v2007
    %v2009 = vpop.f32.mrf.mxu0
    %v2010 = vpop.f32.mrf.mxu0
    %v2011 = vpop.f32.mrf.mxu0
    %2012 = vdwg.mxu0
    %2013 = vrot.lane.b32.xlu0 %v1304, 96
    %v2014 = vpop.permute.xlu0 %2013
    %v2016 = vsel %vm156, %v1770, 0
    %v2019 = vsel %vm640, %v2014, 0
    %2021 = vmatprep.subr.bf16.mxu0 0
    %2022 = vmatpush1.bf16.msra.mxu0 0
    %2023 = vmatprep.subr.bf16.mxu0 0
    %2024 = vmatpush1.bf16.msra.mxu0 0
    %2025 = vmatprep.subr.bf16.mxu0 0
    %2026 = vmatpush1.bf16.msra.mxu0 0
    %2027 = vmatprep.subr.bf16.mxu0 0
    %2028 = vmatpush1.bf16.msra.mxu0 0
    %2029 = vmatprep.subr.bf16.mxu0 0
    %2030 = vmatpush1.bf16.msra.mxu0 0
    %2031 = vmatprep.subr.bf16.mxu0 0
    %2032 = vmatpush1.bf16.msra.mxu0 0
    %2033 = vmatprep.subr.bf16.mxu0 0
    %2034 = vmatpush1.bf16.msra.mxu0 0
    %2035 = vmatprep.subr.bf16.mxu0 0
    %2036 = vmatpush1.bf16.msra.mxu0 %v2019
    %2037 = vmatprep.subr.bf16.mxu0 0
    %2038 = vmatpush2.bf16.msra.mxu0 0
    %2039 = vmatprep.subr.bf16.mxu0 0
    %2040 = vmatpush2.bf16.msra.mxu0 0
    %2041 = vmatprep.subr.bf16.mxu0 0
    %2042 = vmatpush2.bf16.msra.mxu0 0
    %2043 = vmatprep.subr.bf16.mxu0 0
    %2044 = vmatpush2.bf16.msra.mxu0 0
    %2045 = vmatprep.subr.bf16.mxu0 0
    %2046 = vmatpush2.bf16.msra.mxu0 0
    %2047 = vmatprep.subr.bf16.mxu0 0
    %2048 = vmatpush2.bf16.msra.mxu0 0
    %2049 = vmatprep.subr.bf16.mxu0 0
    %2050 = vmatpush2.bf16.msra.mxu0 0
    %2051 = vmatprep.subr.bf16.mxu0 0
    %2052 = vmatpush2.bf16.msra.mxu0 0
    %2053 = vmatprep.mubr.bf16.mxu0 0
    %2054 = vmatmul.mubr.bf16.gmra.mxu0 %v2016
    %v2055 = vpop.f32.mrf.mxu0
    %v2056 = vadd.f32 0.0, %v2055
    %v2057 = vpop.f32.mrf.mxu0
    %v2058 = vpop.f32.mrf.mxu0
    %v2059 = vpop.f32.mrf.mxu0
    %2060 = vdwg.mxu0
    %2061 = vrot.lane.b32.xlu0 %v1306, 96
    %v2062 = vpop.permute.xlu0 %2061
    %v2064 = vsel %vm156, %v1771, 0
    %v2067 = vsel %vm640, %v2062, 0
    %2069 = vmatprep.subr.bf16.mxu0 0
    %2070 = vmatpush1.bf16.msra.mxu0 0
    %2071 = vmatprep.subr.bf16.mxu0 0
    %2072 = vmatpush1.bf16.msra.mxu0 0
    %2073 = vmatprep.subr.bf16.mxu0 0
    %2074 = vmatpush1.bf16.msra.mxu0 0
    %2075 = vmatprep.subr.bf16.mxu0 0
    %2076 = vmatpush1.bf16.msra.mxu0 0
    %2077 = vmatprep.subr.bf16.mxu0 0
    %2078 = vmatpush1.bf16.msra.mxu0 0
    %2079 = vmatprep.subr.bf16.mxu0 0
    %2080 = vmatpush1.bf16.msra.mxu0 0
    %2081 = vmatprep.subr.bf16.mxu0 0
    %2082 = vmatpush1.bf16.msra.mxu0 0
    %2083 = vmatprep.subr.bf16.mxu0 0
    %2084 = vmatpush1.bf16.msra.mxu0 %v2067
    %2085 = vmatprep.subr.bf16.mxu0 0
    %2086 = vmatpush2.bf16.msra.mxu0 0
    %2087 = vmatprep.subr.bf16.mxu0 0
    %2088 = vmatpush2.bf16.msra.mxu0 0
    %2089 = vmatprep.subr.bf16.mxu0 0
    %2090 = vmatpush2.bf16.msra.mxu0 0
    %2091 = vmatprep.subr.bf16.mxu0 0
    %2092 = vmatpush2.bf16.msra.mxu0 0
    %2093 = vmatprep.subr.bf16.mxu0 0
    %2094 = vmatpush2.bf16.msra.mxu0 0
    %2095 = vmatprep.subr.bf16.mxu0 0
    %2096 = vmatpush2.bf16.msra.mxu0 0
    %2097 = vmatprep.subr.bf16.mxu0 0
    %2098 = vmatpush2.bf16.msra.mxu0 0
    %2099 = vmatprep.subr.bf16.mxu0 0
    %2100 = vmatpush2.bf16.msra.mxu0 0
    %2101 = vmatprep.mubr.bf16.mxu0 0
    %2102 = vmatmul.mubr.bf16.gmra.mxu0 %v2064
    %v2103 = vpop.f32.mrf.mxu0
    %v2104 = vadd.f32 0.0, %v2103
    %v2105 = vpop.f32.mrf.mxu0
    %v2106 = vpop.f32.mrf.mxu0
    %v2107 = vpop.f32.mrf.mxu0
    %2108 = vdwg.mxu0
    %2109 = vrot.lane.b32.xlu0 %v1308, 96
    %v2110 = vpop.permute.xlu0 %2109
    %v2112 = vsel %vm156, %v1772, 0
    %v2115 = vsel %vm640, %v2110, 0
    %2117 = vmatprep.subr.bf16.mxu0 0
    %2118 = vmatpush1.bf16.msra.mxu0 0
    %2119 = vmatprep.subr.bf16.mxu0 0
    %2120 = vmatpush1.bf16.msra.mxu0 0
    %2121 = vmatprep.subr.bf16.mxu0 0
    %2122 = vmatpush1.bf16.msra.mxu0 0
    %2123 = vmatprep.subr.bf16.mxu0 0
    %2124 = vmatpush1.bf16.msra.mxu0 0
    %2125 = vmatprep.subr.bf16.mxu0 0
    %2126 = vmatpush1.bf16.msra.mxu0 0
    %2127 = vmatprep.subr.bf16.mxu0 0
    %2128 = vmatpush1.bf16.msra.mxu0 0
    %2129 = vmatprep.subr.bf16.mxu0 0
    %2130 = vmatpush1.bf16.msra.mxu0 0
    %2131 = vmatprep.subr.bf16.mxu0 0
    %2132 = vmatpush1.bf16.msra.mxu0 %v2115
    %2133 = vmatprep.subr.bf16.mxu0 0
    %2134 = vmatpush2.bf16.msra.mxu0 0
    %2135 = vmatprep.subr.bf16.mxu0 0
    %2136 = vmatpush2.bf16.msra.mxu0 0
    %2137 = vmatprep.subr.bf16.mxu0 0
    %2138 = vmatpush2.bf16.msra.mxu0 0
    %2139 = vmatprep.subr.bf16.mxu0 0
    %2140 = vmatpush2.bf16.msra.mxu0 0
    %2141 = vmatprep.subr.bf16.mxu0 0
    %2142 = vmatpush2.bf16.msra.mxu0 0
    %2143 = vmatprep.subr.bf16.mxu0 0
    %2144 = vmatpush2.bf16.msra.mxu0 0
    %2145 = vmatprep.subr.bf16.mxu0 0
    %2146 = vmatpush2.bf16.msra.mxu0 0
    %2147 = vmatprep.subr.bf16.mxu0 0
    %2148 = vmatpush2.bf16.msra.mxu0 0
    %2149 = vmatprep.mubr.bf16.mxu0 0
    %2150 = vmatmul.mubr.bf16.gmra.mxu0 %v2112
    %v2151 = vpop.f32.mrf.mxu0
    %v2152 = vadd.f32 0.0, %v2151
    %v2153 = vpop.f32.mrf.mxu0
    %v2154 = vpop.f32.mrf.mxu0
    %v2155 = vpop.f32.mrf.mxu0
    %2156 = vdwg.mxu0
    %2159 = vrot.lane.b32.xlu0 %v1912, 8
    %v2160 = vpop.permute.xlu0 %2159
    %2161 = vrot.lane.b32.xlu0 %v1960, 8
    %v2162 = vpop.permute.xlu0 %2161
    %2167 = vrot.lane.b32.xlu0 %v2008, 16
    %v2168 = vpop.permute.xlu0 %2167
    %2169 = vrot.lane.b32.xlu0 %v2056, 16
    %v2170 = vpop.permute.xlu0 %2169
    %2175 = vrot.lane.b32.xlu0 %v2104, 24
    %v2176 = vpop.permute.xlu0 %2175
    %2177 = vrot.lane.b32.xlu0 %v2152, 24
    %v2178 = vpop.permute.xlu0 %2177
    %v2181 = vsel %vm156, %v1816, %v2160
    %v2182 = vsel %vm156, %v1864, %v2162
    %v2183 = vsel %vm1046, %v2181, %v2168
    %v2184 = vsel %vm1046, %v2182, %v2170
    %v2185 = vsel %vm1049, %v2183, %v2176
    %v2186 = vsel %vm1049, %v2184, %v2178
    %v2187 = vpack.c.bf16 %v2186, %v2185
    %2188 = vrot.lane.b32.xlu0 %v1175, 32
    %v2189 = vpop.permute.xlu0 %2188
    %2190 = vrot.lane.b32.xlu0 %v1176, 32
    %v2191 = vpop.permute.xlu0 %2190
    %2194 = vrot.lane.b32.xlu0 %v1165, 32
    %v2195 = vpop.permute.xlu0 %2194
    %v2198 = vsel %vm93, %v2187, 0
    %2200 = vmatprep.subr.bf16.mxu0 0
    %2201 = vmatpush1.bf16.msra.mxu0 0
    %2202 = vmatprep.subr.bf16.mxu0 0
    %2203 = vmatpush1.bf16.msra.mxu0 0
    %2204 = vmatprep.subr.bf16.mxu0 0
    %2205 = vmatpush1.bf16.msra.mxu0 0
    %2206 = vmatprep.subr.bf16.mxu0 0
    %2207 = vmatpush1.bf16.msra.mxu0 0
    %2208 = vmatprep.subr.bf16.mxu0 0
    %2209 = vmatpush1.bf16.msra.mxu0 0
    %2210 = vmatprep.subr.bf16.mxu0 0
    %2211 = vmatpush1.bf16.msra.mxu0 0
    %2212 = vmatprep.subr.bf16.mxu0 0
    %2213 = vmatpush1.bf16.msra.mxu0 %v2191
    %2214 = vmatprep.subr.bf16.mxu0 0
    %2215 = vmatpush1.bf16.msra.mxu0 %v2189
    %2216 = vmatprep.subr.bf16.mxu0 0
    %2217 = vmatpush2.bf16.msra.mxu0 0
    %2218 = vmatprep.subr.bf16.mxu0 0
    %2219 = vmatpush2.bf16.msra.mxu0 0
    %2220 = vmatprep.subr.bf16.mxu0 0
    %2221 = vmatpush2.bf16.msra.mxu0 0
    %2222 = vmatprep.subr.bf16.mxu0 0
    %2223 = vmatpush2.bf16.msra.mxu0 0
    %2224 = vmatprep.subr.bf16.mxu0 0
    %2225 = vmatpush2.bf16.msra.mxu0 0
    %2226 = vmatprep.subr.bf16.mxu0 0
    %2227 = vmatpush2.bf16.msra.mxu0 0
    %2228 = vmatprep.subr.bf16.mxu0 0
    %2229 = vmatpush2.bf16.msra.mxu0 0
    %2230 = vmatprep.subr.bf16.mxu0 0
    %2231 = vmatpush2.bf16.msra.mxu0 0
    %2232 = vmatprep.mubr.bf16.mxu0 0
    %2233 = vmatmul.mubr.bf16.gmra.mxu0 %v2198
    %v2234 = vpop.f32.mrf.mxu0
    %v2235 = vadd.f32 %v2195, %v2234
    %v2236 = vpop.f32.mrf.mxu0
    %v2237 = vpop.f32.mrf.mxu0
    %v2238 = vadd.f32 %v2195, %v2237
    %v2239 = vpop.f32.mrf.mxu0
    %2240 = vdwg.mxu0
    %v2241 = vadd.f32 %v2235, %v1153
    %v2242 = vadd.f32 %v2238, %v1154
    %v2243 = vsel %vm93, %v2241, 0.0
    %2244 = vadd.xlane.f32.xlu0 %v2243
    %v2245 = vpop.xlane.xlu0 %2244
    %v2246 = vsel %vm93, %v2242, 0.0
    %2247 = vadd.xlane.f32.xlu0 %v2246
    %v2248 = vpop.xlane.xlu0 %2247
    %v2249 = vmul.f32 %v2245, %v1114
    %v2250 = vmul.f32 %v2248, %v1114
    %v2251 = vsub.f32 %v2241, %v2249
    %v2252 = vsub.f32 %v2242, %v2250
    %v2253 = vmul.f32 %v2251, %v2251
    %v2254 = vmul.f32 %v2252, %v2252
    %v2255 = vsel %vm93, %v2253, 0.0
    %2256 = vadd.xlane.f32.xlu0 %v2255
    %v2257 = vpop.xlane.xlu0 %2256
    %v2258 = vsel %vm93, %v2254, 0.0
    %2259 = vadd.xlane.f32.xlu0 %v2258
    %v2260 = vpop.xlane.xlu0 %2259
    %v2261 = vmul.f32 %v2257, %v1114
    %v2262 = vmul.f32 %v2260, %v1114
    %v2263 = vadd.f32 %v2261, 1e-05
    %v2264 = vadd.f32 %v2262, 1e-05
    %v2265 = vrsqrt.pop %v2263
    %v2266 = vrsqrt.pop %v2264
    %v2267 = vmul.f32 %v2251, %v2265
    %v2268 = vmul.f32 %v2252, %v2266
    %2269 = vrot.lane.b32.xlu0 %v1151, 96
    %v2270 = vpop.permute.xlu0 %2269
    %v2272 = vmul.f32 %v2267, %v2270
    %v2273 = vmul.f32 %v2268, %v2270
    %2274 = vrot.lane.b32.xlu0 %v1151, 64
    %v2275 = vpop.permute.xlu0 %2274
    %v2277 = vadd.f32 %v2272, %v2275
    %v2278 = vadd.f32 %v2273, %v2275
    %v2279 = vpack.c.bf16 %v2278, %v2277
    %v2280 = vld [vmem:[%s3 + $0x8] sm:$0xf]
    %v2281 = vld [vmem:[%s3 + $0x14] sm:$0xf]
    %v2282 = vld [vmem:[%s3 + $0x20] sm:$0xf]
    %v2283 = vld [vmem:[%s3 + $0x2c] sm:$0xf]
    %v2289 = vunpack.c.l.b16 %v2280
    %v2290 = vunpack.c.l.b16 %v2281
    %v2291 = vunpack.c.l.b16 %v2282
    %v2292 = vunpack.c.l.b16 %v2283
    %v2293 = vpack.c.b16 %v2290, %v2289
    %v2294 = vpack.c.b16 %v2292, %v2291
    %v2298 = vsel %vm93, %v2279, 0
    %2300 = vmatprep.subr.bf16.mxu0 0
    %2301 = vmatpush1.bf16.msra.mxu0 0
    %2302 = vmatprep.subr.bf16.mxu0 0
    %2303 = vmatpush1.bf16.msra.mxu0 0
    %2304 = vmatprep.subr.bf16.mxu0 0
    %2305 = vmatpush1.bf16.msra.mxu0 0
    %2306 = vmatprep.subr.bf16.mxu0 0
    %2307 = vmatpush1.bf16.msra.mxu0 0
    %2308 = vmatprep.subr.bf16.mxu0 0
    %2309 = vmatpush1.bf16.msra.mxu0 0
    %2310 = vmatprep.subr.bf16.mxu0 0
    %2311 = vmatpush1.bf16.msra.mxu0 0
    %2312 = vmatprep.subr.bf16.mxu0 0
    %2313 = vmatpush1.bf16.msra.mxu0 %v2294
    %2314 = vmatprep.subr.bf16.mxu0 0
    %2315 = vmatpush1.bf16.msra.mxu0 %v2293
    %2316 = vmatprep.subr.bf16.mxu0 0
    %2317 = vmatpush2.bf16.msra.mxu0 0
    %2318 = vmatprep.subr.bf16.mxu0 0
    %2319 = vmatpush2.bf16.msra.mxu0 0
    %2320 = vmatprep.subr.bf16.mxu0 0
    %2321 = vmatpush2.bf16.msra.mxu0 0
    %2322 = vmatprep.subr.bf16.mxu0 0
    %2323 = vmatpush2.bf16.msra.mxu0 0
    %2324 = vmatprep.subr.bf16.mxu0 0
    %2325 = vmatpush2.bf16.msra.mxu0 0
    %2326 = vmatprep.subr.bf16.mxu0 0
    %2327 = vmatpush2.bf16.msra.mxu0 0
    %2328 = vmatprep.subr.bf16.mxu0 0
    %2329 = vmatpush2.bf16.msra.mxu0 0
    %2330 = vmatprep.subr.bf16.mxu0 0
    %2331 = vmatpush2.bf16.msra.mxu0 0
    %2332 = vmatprep.mubr.bf16.mxu0 0
    %2333 = vmatmul.mubr.bf16.gmra.mxu0 %v2298
    %v2334 = vpop.f32.mrf.mxu0
    %v2335 = vadd.f32 %v1140, %v2334
    %v2336 = vpop.f32.mrf.mxu0
    %v2337 = vpop.f32.mrf.mxu0
    %v2338 = vadd.f32 %v1140, %v2337
    %v2339 = vpop.f32.mrf.mxu0
    %2340 = vdwg.mxu0
    %v2341 = vmax.f32 %v2335, 0.0
    %v2342 = vmax.f32 %v2338, 0.0
    %v2343 = vpack.c.bf16 %v2342, %v2341
    %v2344 = vld [vmem:[%s4] sm:$0xf]
    %v2345 = vld [vmem:[%s4 + $0x4] sm:$0xf]
    %v2346 = vld [vmem:[%s4 + $0x8] sm:$0xf]
    %v2347 = vld [vmem:[%s4 + $0xc] sm:$0xf]
    %v2348 = vld [vmem:[%s4 + $0x10] sm:$0xf]
    %v2349 = vld [vmem:[%s4 + $0x14] sm:$0xf]
    %v2350 = vld [vmem:[%s4 + $0x18] sm:$0xf]
    %v2351 = vld [vmem:[%s4 + $0x1c] sm:$0xf]
    %v2360 = vunpack.c.l.b16 %v2344
    %v2361 = vunpack.c.l.b16 %v2345
    %v2362 = vunpack.c.l.b16 %v2346
    %v2363 = vunpack.c.l.b16 %v2347
    %v2364 = vunpack.c.l.b16 %v2348
    %v2365 = vunpack.c.l.b16 %v2349
    %v2366 = vunpack.c.l.b16 %v2350
    %v2367 = vunpack.c.l.b16 %v2351
    %v2368 = vpack.c.b16 %v2361, %v2360
    %v2369 = vpack.c.b16 %v2363, %v2362
    %v2370 = vpack.c.b16 %v2365, %v2364
    %v2371 = vpack.c.b16 %v2367, %v2366
    %2376 = vrot.lane.b32.xlu0 %v1140, 64
    %v2377 = vpop.permute.xlu0 %2376
    %vm2379 = vcmask 523264
    %v2381 = vsel %vm2379, %v2343, 0
    %2383 = vmatprep.subr.bf16.mxu0 0
    %2384 = vmatpush1.bf16.msra.mxu0 0
    %2385 = vmatprep.subr.bf16.mxu0 0
    %2386 = vmatpush1.bf16.msra.mxu0 0
    %2387 = vmatprep.subr.bf16.mxu0 0
    %2388 = vmatpush1.bf16.msra.mxu0 0
    %2389 = vmatprep.subr.bf16.mxu0 0
    %2390 = vmatpush1.bf16.msra.mxu0 0
    %2391 = vmatprep.subr.bf16.mxu0 0
    %2392 = vmatpush1.bf16.msra.mxu0 %v2371
    %2393 = vmatprep.subr.bf16.mxu0 0
    %2394 = vmatpush1.bf16.msra.mxu0 %v2370
    %2395 = vmatprep.subr.bf16.mxu0 0
    %2396 = vmatpush1.bf16.msra.mxu0 %v2369
    %2397 = vmatprep.subr.bf16.mxu0 0
    %2398 = vmatpush1.bf16.msra.mxu0 %v2368
    %2399 = vmatprep.subr.bf16.mxu0 0
    %2400 = vmatpush2.bf16.msra.mxu0 0
    %2401 = vmatprep.subr.bf16.mxu0 0
    %2402 = vmatpush2.bf16.msra.mxu0 0
    %2403 = vmatprep.subr.bf16.mxu0 0
    %2404 = vmatpush2.bf16.msra.mxu0 0
    %2405 = vmatprep.subr.bf16.mxu0 0
    %2406 = vmatpush2.bf16.msra.mxu0 0
    %2407 = vmatprep.subr.bf16.mxu0 0
    %2408 = vmatpush2.bf16.msra.mxu0 0
    %2409 = vmatprep.subr.bf16.mxu0 0
    %2410 = vmatpush2.bf16.msra.mxu0 0
    %2411 = vmatprep.subr.bf16.mxu0 0
    %2412 = vmatpush2.bf16.msra.mxu0 0
    %2413 = vmatprep.subr.bf16.mxu0 0
    %2414 = vmatpush2.bf16.msra.mxu0 0
    %2415 = vmatprep.mubr.bf16.mxu0 0
    %2416 = vmatmul.mubr.bf16.gmra.mxu0 %v2381
    %v2417 = vpop.f32.mrf.mxu0
    %v2418 = vadd.f32 %v2377, %v2417
    %v2419 = vpop.f32.mrf.mxu0
    %v2420 = vpop.f32.mrf.mxu0
    %v2421 = vadd.f32 %v2377, %v2420
    %v2422 = vpop.f32.mrf.mxu0
    %2423 = vdwg.mxu0
    %v2424 = vadd.f32 %v2418, %v2277
    %v2425 = vadd.f32 %v2421, %v2278
    %v2426 = vsel %vm93, %v2424, 0.0
    %2427 = vadd.xlane.f32.xlu0 %v2426
    %v2428 = vpop.xlane.xlu0 %2427
    %v2429 = vsel %vm93, %v2425, 0.0
    %2430 = vadd.xlane.f32.xlu0 %v2429
    %v2431 = vpop.xlane.xlu0 %2430
    %v2432 = vmul.f32 %v2428, %v1114
    %v2433 = vmul.f32 %v2431, %v1114
    %v2434 = vsub.f32 %v2424, %v2432
    %v2435 = vsub.f32 %v2425, %v2433
    %v2436 = vmul.f32 %v2434, %v2434
    %v2437 = vmul.f32 %v2435, %v2435
    %v2438 = vsel %vm93, %v2436, 0.0
    %2439 = vadd.xlane.f32.xlu0 %v2438
    %v2440 = vpop.xlane.xlu0 %2439
    %v2441 = vsel %vm93, %v2437, 0.0
    %2442 = vadd.xlane.f32.xlu0 %v2441
    %v2443 = vpop.xlane.xlu0 %2442
    %v2444 = vmul.f32 %v2440, %v1114
    %v2445 = vmul.f32 %v2443, %v1114
    %v2446 = vadd.f32 %v2444, 1e-05
    %v2447 = vadd.f32 %v2445, 1e-05
    %v2448 = vrsqrt.pop %v2446
    %v2449 = vrsqrt.pop %v2447
    %v2450 = vmul.f32 %v2434, %v2448
    %v2451 = vmul.f32 %v2435, %v2449
    %2452 = vrot.lane.b32.xlu0 %v1151, 32
    %v2453 = vpop.permute.xlu0 %2452
    %v2455 = vmul.f32 %v2450, %v2453
    %v2456 = vmul.f32 %v2451, %v2453
    %v2457 = vld [vmem:[%s5 + $0x4] sm:$0x1]
    %v2459 = vlaneseq
    %v2460 = vshrl.u32 %v2459, 7
    %v2461 = vsub.s32 0, %v2460
    %v2462 = vrot.slane %v2457, %v2461
    %v2464 = vadd.f32 %v2455, %v2462
    %v2465 = vadd.f32 %v2456, %v2462
    %2466 = vst.msk [vmem:[#allocation8] sm:$0xff] %vm93, %v2464
    %2467 = vst.msk [vmem:[#allocation8 + $0x8] sm:$0xff] %vm93, %v2465
    // Predicated region
    $region38: #{tpu_custom_call.1} parent=1 // pred_check
      _
    $region39: #{tpu_custom_call.1} parent=1 // pred_check_branch
      %2469 = sbr.rel (0) target = $region41
    $region40: #{tpu_custom_call.1} parent=1 // pred_region
      %s2471 = ssub.s32 256, 256
      %2472 = vsyncadd [#allocation4], %s2471
      %s2473 = sshll.u32 [#allocation8], 4
      %s2474 = int_to_ptr.vmem [resolvable:$true] %s2473
      %2479 = dma.vmem_to_hbm [thread:$0]  %s2474, 256, %s6, [#allocation4], 128, 128, 8
    $region41: #{tpu_custom_call.1} parent=1 // pred_fallthru
      _
    // Predicated region
    $region42: #{tpu_custom_call.1} parent=1 // pred_check
      _
    $region43: #{tpu_custom_call.1} parent=1 // pred_check_branch
      %2481 = sbr.rel (0) target = $region45
    $region44: #{tpu_custom_call.1} parent=1 // pred_region
      %2482 = dma.done [#allocation4], 256
    $region45: #{tpu_custom_call.1} parent=1 // pred_fallthru
      _
    %2483 = vsyncpa [#allocation3], 1
    %2484 = vsyncpa [#allocation6], 1
    %2485 = vsyncpa [#allocation4], 1

</llo_original>
